<compile_context>
chip_gen: v5e
topology: v5e:2x2
jax: 0.10.0
libtpu: 0.0.40
codegen_flags: <defaults>
</compile_context>

<pallas_src>
import functools

import jax
import jax.numpy as jnp
import numpy as np
from jax import lax
from jax.experimental import pallas as pl
from jax.experimental.pallas import tpu as pltpu

LEAKY_SLOPE = 1.0          # nn.LeakyReLU(True): negative_slope == True == 1.0
BN_EPS = 1e-5
LANE = 128                 # TPU lane width


def _leaky(x):
    # Identity for slope == 1.0; kept only for the plain-JAX reference.
    return jnp.where(x >= 0, x, LEAKY_SLOPE * x)


def _round_up(x, m):
    return ((x + m - 1) // m) * m


def _pad2(x, rows, cols):
    return jnp.pad(x, ((0, rows - x.shape[0]), (0, cols - x.shape[1])))


# ---------------- generation-aware VMEM budget / tiling ----------------

@functools.lru_cache(maxsize=None)
def _vmem_capacity_bytes():
    """Physical per-core VMEM; 64 MiB fallback is safe on v5e/v6e/v7x."""
    try:
        return int(pltpu.get_tpu_info().vmem_capacity_bytes)
    except Exception:
        return 64 * 1024 * 1024


def _vmem_limit_bytes():
    # 3/4 of physical, capped at 96 MiB (v5e/v6e have 128 MiB, v7x has 64 MiB).
    return int(min(_vmem_capacity_bytes() * 3 // 4, 96 * 1024 * 1024))


def _cparams():
    return pltpu.CompilerParams(dimension_semantics=("parallel",),
                                vmem_limit_bytes=_vmem_limit_bytes())


def _pick_tile(m, bytes_per_row, weight_bytes):
    """Row tile: multiple of 16 (bf16 sublane packing), fits the VMEM budget
    with double-buffering, and keeps the grid >= 2 steps whenever m allows
    (megacore sharding on v7x + software pipelining)."""
    budget = _vmem_limit_bytes() - 2 * weight_bytes - (2 << 20)
    cap = budget // max(bytes_per_row, 1)
    cap = int(max(16, min(cap, 1024)))
    cap = (cap // 16) * 16
    if m > cap:
        return cap
    if m >= 32:
        return _round_up((m + 1) // 2, 16)
    return 16


def _pick_bn_tile(mp, tm, cap_rows=2048):
    """bn_apply is purely HBM-bound: give it the largest tile that divides mp."""
    t = tm
    while t * 2 <= min(cap_rows, mp) and mp % (t * 2) == 0:
        t *= 2
    return t


# ---------------- single-buffered weight blocks (probed) ----------------

_WEIGHT_BUF1 = None        # None/False -> default double-buffering


def probe_single_buffered_weights():
    """Check once (outside jit) whether this JAX/Mosaic build honours
    pl.Buffered(1) on a grid-invariant BlockSpec; fall back silently."""
    global _WEIGHT_BUF1
    if _WEIGHT_BUF1 is not None:
        return _WEIGHT_BUF1
    try:
        def _k(x_ref, w_ref, o_ref):
            o_ref[...] = x_ref[...] + w_ref[...]

        w_spec = pl.BlockSpec((8, 128), lambda i: (0, 0),
                              pipeline_mode=pl.Buffered(1))
        out = pl.pallas_call(
            _k,
            out_shape=jax.ShapeDtypeStruct((16, 128), jnp.float32),
            grid=(2,),
            in_specs=[pl.BlockSpec((8, 128), lambda i: (i, 0)), w_spec],
            out_specs=pl.BlockSpec((8, 128), lambda i: (i, 0)),
        )(jnp.zeros((16, 128), jnp.float32), jnp.ones((8, 128), jnp.float32))
        jax.block_until_ready(out)
        _WEIGHT_BUF1 = True
    except Exception:
        _WEIGHT_BUF1 = False
    return _WEIGHT_BUF1


def _const_spec(shape):
    """BlockSpec for a grid-invariant (weight / bias / BN-param) operand."""
    nd = len(shape)
    index_map = lambda i, _n=nd: (0,) * _n
    if _WEIGHT_BUF1:
        return pl.BlockSpec(shape, index_map, pipeline_mode=pl.Buffered(1))
    return pl.BlockSpec(shape, index_map)


# ---------------- Pallas kernels (hot path) ----------------

def _conv12s_kernel(a1_ref, w1_ref, w2_ref, ws_ref, sb_ref, y2_ref, ys_ref):
    """conv1(3x3) -> conv2(1x1) and shortcut conv(3x3)+bias for one a1 tile.

    bf16 operands, f32 MXU accumulation.  LeakyReLU(slope=1.0) == identity.
    """
    a1 = a1_ref[...]
    y1 = jnp.dot(a1, w1_ref[...], preferred_element_type=jnp.float32)
    y2 = jnp.dot(y1.astype(jnp.bfloat16), w2_ref[...],
                 preferred_element_type=jnp.float32)
    y2_ref[...] = y2.astype(y2_ref.dtype)
    ys_ref[...] = jnp.dot(a1, ws_ref[...],
                          preferred_element_type=jnp.float32) + sb_ref[...]


def _conv12_kernel(a1_ref, w1_ref, w2_ref, y2_ref):
    """conv1(3x3) -> conv2(1x1) (identity-shortcut variant)."""
    y1 = jnp.dot(a1_ref[...], w1_ref[...], preferred_element_type=jnp.float32)
    y2 = jnp.dot(y1.astype(jnp.bfloat16), w2_ref[...],
                 preferred_element_type=jnp.float32)
    y2_ref[...] = y2.astype(y2_ref.dtype)


def _make_conv3_kernel(tm, m_total):
    """conv3(3x3) + residual add + per-tile BN partials (masked for pad rows).

    Stats block rows: 0 = masked column sums, 1 = centered second moments
    (sum of (s - tile_mean)^2), rows 2..7 zero -- written with ONE dense store.
    """
    def _conv3_res_stats_kernel(a3_ref, w3_ref, ys_ref, s_ref, st_ref):
        s = jnp.dot(a3_ref[...], w3_ref[...],
                    preferred_element_type=jnp.float32) + ys_ref[...]
        s_ref[...] = s

        base = pl.program_id(0) * tm
        rows = base + lax.broadcasted_iota(jnp.int32, (tm, 1), 0)
        valid = rows < m_total
        cnt = jnp.minimum(m_total - base, tm).astype(jnp.float32)

        sv = jnp.where(valid, s, 0.0)
        csum = jnp.sum(sv, axis=0, keepdims=True)               # (1, COp)
        mu = csum / cnt
        d = jnp.where(valid, s - mu, 0.0)
        m2 = jnp.sum(d * d, axis=0, keepdims=True)               # (1, COp)

        rid = lax.broadcasted_iota(jnp.int32, (8, 1), 0)
        st_ref[...] = jnp.where(rid == 0, csum,
                                jnp.where(rid == 1, m2, 0.0))
    return _conv3_res_stats_kernel


def _bn_apply_kernel(s_ref, p_ref, o_ref):
    """Apply precomputed global BN: p row 0 = scale, row 1 = shift."""
    o_ref[...] = s_ref[...] * p_ref[0:1, :] + p_ref[1:2, :]


# ---------------- Pallas wrappers ----------------

def fused_conv12_shortcut(a1, w1, w2, ws, sbias, tm):
    mp, k1 = a1.shape
    cm = w1.shape[1]
    cop = w2.shape[1]
    grid_m = mp // tm
    return pl.pallas_call(
        _conv12s_kernel,
        out_shape=(jax.ShapeDtypeStruct((mp, cop), jnp.bfloat16),
                   jax.ShapeDtypeStruct((mp, cop), jnp.float32)),
        grid=(grid_m,),
        in_specs=[pl.BlockSpec((tm, k1), lambda i: (i, 0)),
                  _const_spec((k1, cm)),
                  _const_spec((cm, cop)),
                  _const_spec((k1, cop)),
                  _const_spec((1, cop))],
        out_specs=(pl.BlockSpec((tm, cop), lambda i: (i, 0)),
                   pl.BlockSpec((tm, cop), lambda i: (i, 0))),
        compiler_params=_cparams(),
        cost_estimate=pl.CostEstimate(
            flops=2 * mp * (k1 * cm + cm * cop + k1 * cop),
            transcendentals=0,
            bytes_accessed=2 * mp * (k1 + cop) + 4 * mp * cop
            + 2 * (k1 * cm + cm * cop + k1 * cop) + 4 * cop),
    )(a1, w1, w2, ws, sbias)


def fused_conv12(a1, w1, w2, tm):
    mp, k1 = a1.shape
    cm = w1.shape[1]
    cop = w2.shape[1]
    grid_m = mp // tm
    return pl.pallas_call(
        _conv12_kernel,
        out_shape=jax.ShapeDtypeStruct((mp, cop), jnp.bfloat16),
        grid=(grid_m,),
        in_specs=[pl.BlockSpec((tm, k1), lambda i: (i, 0)),
                  _const_spec((k1, cm)),
                  _const_spec((cm, cop))],
        out_specs=pl.BlockSpec((tm, cop), lambda i: (i, 0)),
        compiler_params=_cparams(),
        cost_estimate=pl.CostEstimate(
            flops=2 * mp * (k1 * cm + cm * cop),
            transcendentals=0,
            bytes_accessed=2 * mp * (k1 + cop) + 2 * (k1 * cm + cm * cop)),
    )(a1, w1, w2)


def conv3_residual_stats(a3, w3, ys, tm, m_total):
    mp, k3 = a3.shape
    cop = w3.shape[1]
    grid_m = mp // tm
    return pl.pallas_call(
        _make_conv3_kernel(tm, m_total),
        out_shape=(jax.ShapeDtypeStruct((mp, cop), jnp.float32),
                   jax.ShapeDtypeStruct((grid_m * 8, cop), jnp.float32)),
        grid=(grid_m,),
        in_specs=[pl.BlockSpec((tm, k3), lambda i: (i, 0)),
                  _const_spec((k3, cop)),
                  pl.BlockSpec((tm, cop), lambda i: (i, 0))],
        out_specs=(pl.BlockSpec((tm, cop), lambda i: (i, 0)),
                   pl.BlockSpec((8, cop), lambda i: (i, 0))),
        compiler_params=_cparams(),
        cost_estimate=pl.CostEstimate(
            flops=2 * mp * k3 * cop + 6 * mp * cop,
            transcendentals=0,
            bytes_accessed=2 * mp * k3 + 8 * mp * cop + 2 * k3 * cop),
    )(a3, w3, ys)


def bn_apply(s, p, tbn):
    mp, cop = s.shape
    grid_m = mp // tbn
    return pl.pallas_call(
        _bn_apply_kernel,
        out_shape=jax.ShapeDtypeStruct((mp, cop), jnp.float32),
        grid=(grid_m,),
        in_specs=[pl.BlockSpec((tbn, cop), lambda i: (i, 0)),
                  _const_spec((8, cop))],
        out_specs=pl.BlockSpec((tbn, cop), lambda i: (i, 0)),
        input_output_aliases={0: 0},          # write BN result in place over s
        compiler_params=_cparams(),
        cost_estimate=pl.CostEstimate(
            flops=2 * mp * cop, transcendentals=0,
            bytes_accessed=4 * (2 * mp * cop + 8 * cop)),
    )(s, p)


# ---------------- glue: im2col + weight layout ----------------

def im2col(x_nhwc, kh, kw, stride, pad):
    # TODO(synk): replace with in-kernel 3x3 halo DMA + 9 shifted jnp.dot's to
    # avoid the kh*kw HBM blow-up of the conv inputs for large channel counts.
    x_p = jnp.pad(x_nhwc, ((0, 0), (pad, pad), (pad, pad), (0, 0)))
    n, hp, wp, c = x_p.shape
    ho = (hp - kh) // stride + 1
    wo = (wp - kw) // stride + 1
    cols = []
    for ky in range(kh):
        for kx in range(kw):
            patch = x_p[:, ky:ky + stride * ho:stride,
                        kx:kx + stride * wo:stride, :]
            cols.append(patch.reshape(n * ho * wo, c))
    return jnp.concatenate(cols, axis=1), (n, ho, wo)


def torch_w_to_mat(w):
    # torch Conv2d weight (Cout, Cin, KH, KW) -> (KH*KW*Cin, Cout),
    # matching im2col column ordering [(ky, kx) outer, ci inner].
    return jnp.transpose(w, (2, 3, 1, 0)).reshape(-1, w.shape[0])


# ---------------- ResBlock forward (Pallas) ----------------

def res_block_forward(x_nchw, params, stride):
    x = jnp.transpose(x_nchw, (0, 2, 3, 1)).astype(jnp.float32)  # NHWC, f32
    n, h, w, cin = x.shape
    cmid = params["w1"].shape[0]
    cout = params["w3"].shape[0]

    # -- conv1 / shortcut patches (bf16 operands; conv-K padded to 128) --
    a1, (_, h1, w1_) = im2col(x.astype(jnp.bfloat16), 3, 3, stride, 1)
    m = n * h1 * w1_

    k1p = _round_up(a1.shape[1], LANE)
    cmidp = _round_up(cmid, LANE)
    cop = _round_up(cout, LANE)                 # lane-dense outputs
    k3p = _round_up(9 * cout, LANE)

    w1m = _pad2(torch_w_to_mat(params["w1"]), k1p, cmidp).astype(jnp.bfloat16)
    w2m = _pad2(torch_w_to_mat(params["w2"]), cmidp, cop).astype(jnp.bfloat16)
    w3m = _pad2(torch_w_to_mat(params["w3"]), k3p, cop).astype(jnp.bfloat16)

    # shared row tile for the two GEMM passes (VMEM-budget + megacore aware)
    bpr = max(2 * (2 * k1p + 2 * cop + 4 * cop),     # pass 1 (double-buffered)
              2 * (2 * k3p + 4 * cop + 4 * cop))     # pass 2
    wbytes = max(2 * (k1p * cmidp + cmidp * cop + k1p * cop) + 4 * cop,
                 2 * k3p * cop)
    tm = _pick_tile(m, bpr, wbytes)
    mp = _round_up(m, tm)
    grid_m = mp // tm

    a1p = _pad2(a1, mp, k1p)

    identity_sc = (stride == 1 and cin == cout)
    if identity_sc:
        y2p = fused_conv12(a1p, w1m, w2m, tm)
        ysp = _pad2(x.reshape(m, cin), mp, cop)          # identity shortcut, f32
    else:
        wsm = _pad2(torch_w_to_mat(params["ws"]), k1p, cop).astype(jnp.bfloat16)
        sbp = _pad2(params["bs"].reshape(1, cout).astype(jnp.float32), 1, cop)
        y2p, ysp = fused_conv12_shortcut(a1p, w1m, w2m, wsm, sbp, tm)

    # -- conv3 patches on y2 (kept bf16; only valid rows / channels) --
    y2 = y2p[:m, :cout].reshape(n, h1, w1_, cout)
    a3, _ = im2col(y2, 3, 3, 1, 1)
    a3p = _pad2(a3, mp, k3p)

    # -- conv3 + residual add + per-tile BN partials (fused kernel) --
    s, stats = conv3_residual_stats(a3p, w3m, ysp, tm, m)

    # -- merge per-tile stats (grouped Welford/Chan; no E[x^2]-E[x]^2) --
    stats = stats.reshape(grid_m, 8, cop)
    csum_t = stats[:, 0, :]                              # (grid_m, COp)
    m2_t = stats[:, 1, :]
    n_t = np.minimum(tm, m - tm * np.arange(grid_m)).astype(np.float32)
    mean = jnp.sum(csum_t, axis=0) / m
    mu_t = csum_t / n_t[:, None]
    m2 = jnp.sum(m2_t, axis=0) + jnp.sum(n_t[:, None] * (mu_t - mean) ** 2,
                                         axis=0)
    var = m2 / m

    gamma = jnp.pad(params["gamma"].astype(jnp.float32), (0, cop - cout))
    beta = jnp.pad(params["beta"].astype(jnp.float32), (0, cop - cout))
    scale = gamma * lax.rsqrt(var + BN_EPS)
    shift = beta - mean * scale
    p = jnp.zeros((8, cop), jnp.float32).at[0].set(scale).at[1].set(shift)

    # -- apply BN scale/shift (HBM-bound; big tile; output aliased onto s) --
    tbn = _pick_bn_tile(mp, tm)
    outp = bn_apply(s, p, tbn)

    out = outp[:m, :cout].reshape(n, h1, w1_, cout)
    return jnp.transpose(out, (0, 3, 1, 2))              # NCHW


# ---------------- plain-JAX reference for verification ----------------

def ref_forward(x_nchw, params, stride, bf16_operands=True):
    """XLA reference.  With bf16_operands=True the conv operands (and the
    HBM-level intermediates y1/y2) are rounded to bf16, mirroring the kernel's
    deliberate precision choices, while all accumulation stays f32 (HIGHEST).
    The remaining kernel/reference difference is accumulation order only."""
    def r(a):
        return a.astype(jnp.bfloat16).astype(jnp.float32) if bf16_operands else a

    dn = lax.conv_dimension_numbers(x_nchw.shape, params["w1"].shape,
                                    ("NCHW", "OIHW", "NCHW"))

    def conv(x, w, s, p):
        return lax.conv_general_dilated(x, w, (s, s), [(p, p), (p, p)],
                                        dimension_numbers=dn,
                                        precision=lax.Precision.HIGHEST)

    xr = r(x_nchw)
    y = _leaky(conv(xr, r(params["w1"]), stride, 1))
    y = _leaky(conv(r(y), r(params["w2"]), 1, 0))
    y = conv(r(y), r(params["w3"]), 1, 1)

    cin = x_nchw.shape[1]
    cout = params["w3"].shape[0]
    if stride == 1 and cin == cout:
        sc = x_nchw
    else:
        sc = conv(xr, r(params["ws"]), stride, 1) \
            + params["bs"].reshape(1, -1, 1, 1)
    o = _leaky(y + sc)
    mean = o.mean(axis=(0, 2, 3), keepdims=True)
    var = ((o - mean) ** 2).mean(axis=(0, 2, 3), keepdims=True)
    return (o - mean) / jnp.sqrt(var + BN_EPS) \
        * params["gamma"].reshape(1, -1, 1, 1) \
        + params["beta"].reshape(1, -1, 1, 1)


if __name__ == "__main__":
    probe_single_buffered_weights()           # must run outside jit

    key = jax.random.PRNGKey(0)
    ks = jax.random.split(key, 8)

    fwd = jax.jit(res_block_forward, static_argnums=(2,))

    # --- test 1: strided block (conv-shortcut path) ---
    N, Cin, H, W = 2, 4, 16, 16
    stride = 2
    Cout = 8
    Cmid = Cin * stride
    params = {
        "w1": 0.1 * jax.random.normal(ks[0], (Cmid, Cin, 3, 3), jnp.float32),
        "w2": 0.1 * jax.random.normal(ks[1], (Cout, Cmid, 1, 1), jnp.float32),
        "w3": 0.1 * jax.random.normal(ks[2], (Cout, Cout, 3, 3), jnp.float32),
        "ws": 0.1 * jax.random.normal(ks[3], (Cout, Cin, 3, 3), jnp.float32),
        "bs": 0.1 * jax.random.normal(ks[4], (Cout,), jnp.float32),
        "gamma": jnp.ones((Cout,), jnp.float32),   # BatchNorm2d default weight
        "beta": jnp.zeros((Cout,), jnp.float32),   # BatchNorm2d default bias
    }
    x = jax.random.normal(ks[5], (N, Cin, H, W), jnp.float32)

    out = jax.block_until_ready(fwd(x, params, stride))
    ref = jax.block_until_ready(ref_forward(x, params, stride))
    assert out.shape == ref.shape == (N, Cout, H // stride, W // stride)
    np.testing.assert_allclose(np.asarray(out), np.asarray(ref),
                               rtol=2e-3, atol=2e-3)

    # --- test 2: stride-1, cin==cout block (identity-shortcut path) ---
    C2 = 8
    params2 = {
        "w1": 0.1 * jax.random.normal(ks[6], (C2, C2, 3, 3), jnp.float32),
        "w2": 0.1 * jax.random.normal(ks[7], (C2, C2, 1, 1), jnp.float32),
        "w3": 0.1 * jax.random.normal(ks[0], (C2, C2, 3, 3), jnp.float32),
        "gamma": jnp.ones((C2,), jnp.float32),
        "beta": jnp.zeros((C2,), jnp.float32),
    }
    x2 = jax.random.normal(ks[1], (2, C2, 8, 8), jnp.float32)
    out2 = jax.block_until_ready(fwd(x2, params2, 1))
    ref2 = jax.block_until_ready(ref_forward(x2, params2, 1))
    assert out2.shape == ref2.shape == (2, C2, 8, 8)
    np.testing.assert_allclose(np.asarray(out2), np.asarray(ref2),
                               rtol=2e-3, atol=2e-3)

    print("KERNEL_OK")
</pallas_src>

<mosaic_0001>
module attributes {stable_mosaic.version = 11 : i64} {
  func.func @_k(%arg0: i32, %arg1: memref<8x128xf32, #tpu.memory_space<vmem>>, %arg2: memref<8x128xf32, #tpu.memory_space<vmem>>, %arg3: memref<8x128xf32, #tpu.memory_space<vmem>>) attributes {dimension_semantics = [#tpu.dimension_semantics<arbitrary>], iteration_bounds = array<i64: 2>, scalar_prefetch = 0 : i64, scratch_operands = 0 : i64, tpu.core_type = #tpu.core_type<tc>, window_params = [{transform_indices = @transform_0, window_bounds = array<i64: 8, 128>}, {pipeline_mode = #tpu.pipeline_mode<synchronous>, transform_indices = @transform_1, window_bounds = array<i64: 8, 128>}, {transform_indices = @transform_2, window_bounds = array<i64: 8, 128>}]} {
    %c0 = arith.constant 0 : index
    %c0_0 = arith.constant 0 : index
    %0 = vector.load %arg1[%c0, %c0_0] : memref<8x128xf32, #tpu.memory_space<vmem>>, vector<8x128xf32>
    %c0_1 = arith.constant 0 : index
    %c0_2 = arith.constant 0 : index
    %1 = vector.load %arg2[%c0_1, %c0_2] : memref<8x128xf32, #tpu.memory_space<vmem>>, vector<8x128xf32>
    %2 = arith.addf %0, %1 : vector<8x128xf32>
    %c0_3 = arith.constant 0 : index
    %c0_4 = arith.constant 0 : index
    %3 = vector.load %arg3[%c0_3, %c0_4] : memref<8x128xf32, #tpu.memory_space<vmem>>, vector<8x128xf32>
    tpu.vector_store %arg3[%c0_3, %c0_4], %2 {strides = array<i32>} : memref<8x128xf32, #tpu.memory_space<vmem>>, vector<8x128xf32>,
    return
  }
  func.func @transform_0(%arg0: i32) -> (i32, i32) {
    %c0_i32 = arith.constant 0 : i32
    %c0_i32_0 = arith.constant 0 : i32
    return %arg0, %c0_i32 : i32, i32
  }
  func.func @transform_1(%arg0: i32) -> (i32, i32) {
    %c0_i32 = arith.constant 0 : i32
    %c0_i32_0 = arith.constant 0 : i32
    %c0_i32_1 = arith.constant 0 : i32
    return %c0_i32, %c0_i32_0 : i32, i32
  }
  func.func @transform_2(%arg0: i32) -> (i32, i32) {
    %c0_i32 = arith.constant 0 : i32
    %c0_i32_0 = arith.constant 0 : i32
    return %arg0, %c0_i32 : i32, i32
  }
}

module attributes {stable_mosaic.version = 11 : i64} {
  func.func @_conv12s_kernel(%arg0: i32, %arg1: memref<64x128xbf16, #tpu.memory_space<vmem>>, %arg2: memref<128x128xbf16, #tpu.memory_space<vmem>>, %arg3: memref<128x128xbf16, #tpu.memory_space<vmem>>, %arg4: memref<128x128xbf16, #tpu.memory_space<vmem>>, %arg5: memref<1x128xf32, #tpu.memory_space<vmem>>, %arg6: memref<64x128xbf16, #tpu.memory_space<vmem>>, %arg7: memref<64x128xf32, #tpu.memory_space<vmem>>) attributes {dimension_semantics = [#tpu.dimension_semantics<parallel>], iteration_bounds = array<i64: 2>, scalar_prefetch = 0 : i64, scratch_operands = 0 : i64, tpu.core_type = #tpu.core_type<tc>, window_params = [{transform_indices = @transform_0, window_bounds = array<i64: 64, 128>}, {pipeline_mode = #tpu.pipeline_mode<synchronous>, transform_indices = @transform_1, window_bounds = array<i64: 128, 128>}, {pipeline_mode = #tpu.pipeline_mode<synchronous>, transform_indices = @transform_2, window_bounds = array<i64: 128, 128>}, {pipeline_mode = #tpu.pipeline_mode<synchronous>, transform_indices = @transform_3, window_bounds = array<i64: 128, 128>}, {pipeline_mode = #tpu.pipeline_mode<synchronous>, transform_indices = @transform_4, window_bounds = array<i64: 1, 128>}, {transform_indices = @transform_5, window_bounds = array<i64: 64, 128>}, {transform_indices = @transform_6, window_bounds = array<i64: 64, 128>}]} {
    %c0 = arith.constant 0 : index
    %c0_0 = arith.constant 0 : index
    %0 = vector.load %arg1[%c0, %c0_0] : memref<64x128xbf16, #tpu.memory_space<vmem>>, vector<64x128xbf16>
    %c0_1 = arith.constant 0 : index
    %c0_2 = arith.constant 0 : index
    %1 = vector.load %arg2[%c0_1, %c0_2] : memref<128x128xbf16, #tpu.memory_space<vmem>>, vector<128x128xbf16>
    %cst = arith.constant dense<0.000000e+00> : vector<64x128xf32>
    %2 = tpu.matmul %0, %1, %cst {dimension_numbers = #tpu.dot_dimension_numbers<[1], [0], [0], [1], [0, 0, 1, 1], [], []>} : vector<64x128xbf16>, vector<128x128xbf16>, vector<64x128xf32> -> vector<64x128xf32>
    %3 = arith.truncf %2 : vector<64x128xf32> to vector<64x128xbf16>
    %c0_3 = arith.constant 0 : index
    %c0_4 = arith.constant 0 : index
    %4 = vector.load %arg3[%c0_3, %c0_4] : memref<128x128xbf16, #tpu.memory_space<vmem>>, vector<128x128xbf16>
    %cst_5 = arith.constant dense<0.000000e+00> : vector<64x128xf32>
    %5 = tpu.matmul %3, %4, %cst_5 {dimension_numbers = #tpu.dot_dimension_numbers<[1], [0], [0], [1], [0, 0, 1, 1], [], []>} : vector<64x128xbf16>, vector<128x128xbf16>, vector<64x128xf32> -> vector<64x128xf32>
    %6 = arith.truncf %5 : vector<64x128xf32> to vector<64x128xbf16>
    %c0_6 = arith.constant 0 : index
    %c0_7 = arith.constant 0 : index
    %7 = vector.load %arg6[%c0_6, %c0_7] : memref<64x128xbf16, #tpu.memory_space<vmem>>, vector<64x128xbf16>
    tpu.vector_store %arg6[%c0_6, %c0_7], %6 {strides = array<i32>} : memref<64x128xbf16, #tpu.memory_space<vmem>>, vector<64x128xbf16>,
    %c0_8 = arith.constant 0 : index
    %c0_9 = arith.constant 0 : index
    %8 = vector.load %arg4[%c0_8, %c0_9] : memref<128x128xbf16, #tpu.memory_space<vmem>>, vector<128x128xbf16>
    %cst_10 = arith.constant dense<0.000000e+00> : vector<64x128xf32>
    %9 = tpu.matmul %0, %8, %cst_10 {dimension_numbers = #tpu.dot_dimension_numbers<[1], [0], [0], [1], [0, 0, 1, 1], [], []>} : vector<64x128xbf16>, vector<128x128xbf16>, vector<64x128xf32> -> vector<64x128xf32>
    %c0_11 = arith.constant 0 : index
    %c0_12 = arith.constant 0 : index
    %10 = vector.load %arg5[%c0_11, %c0_12] : memref<1x128xf32, #tpu.memory_space<vmem>>, vector<1x128xf32>
    %11 = vector.broadcast %10 : vector<1x128xf32> to vector<64x128xf32>
    %12 = arith.addf %9, %11 : vector<64x128xf32>
    %c0_13 = arith.constant 0 : index
    %c0_14 = arith.constant 0 : index
    %13 = vector.load %arg7[%c0_13, %c0_14] : memref<64x128xf32, #tpu.memory_space<vmem>>, vector<64x128xf32>
    tpu.vector_store %arg7[%c0_13, %c0_14], %12 {strides = array<i32>} : memref<64x128xf32, #tpu.memory_space<vmem>>, vector<64x128xf32>,
    return
  }
  func.func @transform_0(%arg0: i32) -> (i32, i32) {
    %c0_i32 = arith.constant 0 : i32
    %c0_i32_0 = arith.constant 0 : i32
    return %arg0, %c0_i32 : i32, i32
  }
  func.func @transform_1(%arg0: i32) -> (i32, i32) {
    %c0_i32 = arith.constant 0 : i32
    %c0_i32_0 = arith.constant 0 : i32
    %c0_i32_1 = arith.constant 0 : i32
    return %c0_i32, %c0_i32_0 : i32, i32
  }
  func.func @transform_2(%arg0: i32) -> (i32, i32) {
    %c0_i32 = arith.constant 0 : i32
    %c0_i32_0 = arith.constant 0 : i32
    %c0_i32_1 = arith.constant 0 : i32
    return %c0_i32, %c0_i32_0 : i32, i32
  }
  func.func @transform_3(%arg0: i32) -> (i32, i32) {
    %c0_i32 = arith.constant 0 : i32
    %c0_i32_0 = arith.constant 0 : i32
    %c0_i32_1 = arith.constant 0 : i32
    return %c0_i32, %c0_i32_0 : i32, i32
  }
  func.func @transform_4(%arg0: i32) -> (i32, i32) {
    %c0_i32 = arith.constant 0 : i32
    %c0_i32_0 = arith.constant 0 : i32
    %c0_i32_1 = arith.constant 0 : i32
    return %c0_i32, %c0_i32_0 : i32, i32
  }
  func.func @transform_5(%arg0: i32) -> (i32, i32) {
    %c0_i32 = arith.constant 0 : i32
    %c0_i32_0 = arith.constant 0 : i32
    return %arg0, %c0_i32 : i32, i32
  }
  func.func @transform_6(%arg0: i32) -> (i32, i32) {
    %c0_i32 = arith.constant 0 : i32
    %c0_i32_0 = arith.constant 0 : i32
    return %arg0, %c0_i32 : i32, i32
  }
}

module attributes {stable_mosaic.version = 11 : i64} {
  func.func @_bn_apply_kernel(%arg0: i32, %arg1: memref<128x128xf32, #tpu.memory_space<vmem>>, %arg2: memref<8x128xf32, #tpu.memory_space<vmem>>, %arg3: memref<128x128xf32, #tpu.memory_space<vmem>>) attributes {dimension_semantics = [#tpu.dimension_semantics<parallel>], iteration_bounds = array<i64: 1>, scalar_prefetch = 0 : i64, scratch_operands = 0 : i64, tpu.core_type = #tpu.core_type<tc>, window_params = [{transform_indices = @transform_0, window_bounds = array<i64: 128, 128>}, {pipeline_mode = #tpu.pipeline_mode<synchronous>, transform_indices = @transform_1, window_bounds = array<i64: 8, 128>}, {transform_indices = @transform_2, window_bounds = array<i64: 128, 128>}]} {
    %c0 = arith.constant 0 : index
    %c0_0 = arith.constant 0 : index
    %0 = vector.load %arg1[%c0, %c0_0] : memref<128x128xf32, #tpu.memory_space<vmem>>, vector<128x128xf32>
    %c0_1 = arith.constant 0 : index
    %c0_2 = arith.constant 0 : index
    %1 = vector.load %arg2[%c0_1, %c0_2] : memref<8x128xf32, #tpu.memory_space<vmem>>, vector<1x128xf32>
    %2 = vector.broadcast %1 : vector<1x128xf32> to vector<128x128xf32>
    %3 = arith.mulf %0, %2 : vector<128x128xf32>
    %c1 = arith.constant 1 : index
    %c0_3 = arith.constant 0 : index
    %4 = vector.load %arg2[%c1, %c0_3] : memref<8x128xf32, #tpu.memory_space<vmem>>, vector<1x128xf32>
    %5 = vector.broadcast %4 : vector<1x128xf32> to vector<128x128xf32>
    %6 = arith.addf %3, %5 : vector<128x128xf32>
    %c0_4 = arith.constant 0 : index
    %c0_5 = arith.constant 0 : index
    %7 = vector.load %arg3[%c0_4, %c0_5] : memref<128x128xf32, #tpu.memory_space<vmem>>, vector<128x128xf32>
    tpu.vector_store %arg3[%c0_4, %c0_5], %6 {strides = array<i32>} : memref<128x128xf32, #tpu.memory_space<vmem>>, vector<128x128xf32>,
    return
  }
  func.func @transform_0(%arg0: i32) -> (i32, i32) {
    %c0_i32 = arith.constant 0 : i32
    %c0_i32_0 = arith.constant 0 : i32
    return %arg0, %c0_i32 : i32, i32
  }
  func.func @transform_1(%arg0: i32) -> (i32, i32) {
    %c0_i32 = arith.constant 0 : i32
    %c0_i32_0 = arith.constant 0 : i32
    %c0_i32_1 = arith.constant 0 : i32
    return %c0_i32, %c0_i32_0 : i32, i32
  }
  func.func @transform_2(%arg0: i32) -> (i32, i32) {
    %c0_i32 = arith.constant 0 : i32
    %c0_i32_0 = arith.constant 0 : i32
    return %arg0, %c0_i32 : i32, i32
  }
}

module attributes {stable_mosaic.version = 11 : i64} {
  func.func @_conv3_res_stats_kernel(%arg0: i32, %arg1: memref<64x128xbf16, #tpu.memory_space<vmem>>, %arg2: memref<128x128xbf16, #tpu.memory_space<vmem>>, %arg3: memref<64x128xf32, #tpu.memory_space<vmem>>, %arg4: memref<64x128xf32, #tpu.memory_space<vmem>>, %arg5: memref<8x128xf32, #tpu.memory_space<vmem>>) attributes {dimension_semantics = [#tpu.dimension_semantics<parallel>], iteration_bounds = array<i64: 2>, scalar_prefetch = 0 : i64, scratch_operands = 0 : i64, tpu.core_type = #tpu.core_type<tc>, window_params = [{transform_indices = @transform_0, window_bounds = array<i64: 64, 128>}, {pipeline_mode = #tpu.pipeline_mode<synchronous>, transform_indices = @transform_1, window_bounds = array<i64: 128, 128>}, {transform_indices = @transform_2, window_bounds = array<i64: 64, 128>}, {transform_indices = @transform_3, window_bounds = array<i64: 64, 128>}, {transform_indices = @transform_4, window_bounds = array<i64: 8, 128>}]} {
    %c0 = arith.constant 0 : index
    %c0_0 = arith.constant 0 : index
    %0 = vector.load %arg1[%c0, %c0_0] : memref<64x128xbf16, #tpu.memory_space<vmem>>, vector<64x128xbf16>
    %c0_1 = arith.constant 0 : index
    %c0_2 = arith.constant 0 : index
    %1 = vector.load %arg2[%c0_1, %c0_2] : memref<128x128xbf16, #tpu.memory_space<vmem>>, vector<128x128xbf16>
    %cst = arith.constant dense<0.000000e+00> : vector<64x128xf32>
    %2 = tpu.matmul %0, %1, %cst {dimension_numbers = #tpu.dot_dimension_numbers<[1], [0], [0], [1], [0, 0, 1, 1], [], []>} : vector<64x128xbf16>, vector<128x128xbf16>, vector<64x128xf32> -> vector<64x128xf32>
    %c0_3 = arith.constant 0 : index
    %c0_4 = arith.constant 0 : index
    %3 = vector.load %arg3[%c0_3, %c0_4] : memref<64x128xf32, #tpu.memory_space<vmem>>, vector<64x128xf32>
    %4 = arith.addf %2, %3 : vector<64x128xf32>
    %c0_5 = arith.constant 0 : index
    %c0_6 = arith.constant 0 : index
    %5 = vector.load %arg4[%c0_5, %c0_6] : memref<64x128xf32, #tpu.memory_space<vmem>>, vector<64x128xf32>
    tpu.vector_store %arg4[%c0_5, %c0_6], %4 {strides = array<i32>} : memref<64x128xf32, #tpu.memory_space<vmem>>, vector<64x128xf32>,
    %c64_i32 = arith.constant 64 : i32
    %6 = arith.muli %arg0, %c64_i32 : i32
    %7 = tpu.iota {dimensions = array<i32: 0>} : vector<64x1xi32>
    %8 = vector.broadcast %6 : i32 to vector<64x1xi32>
    %9 = arith.addi %8, %7 : vector<64x1xi32>
    %c128_i32 = arith.constant 128 : i32
    %10 = vector.broadcast %c128_i32 : i32 to vector<64x1xi32>
    %11 = arith.cmpi slt, %9, %10 : vector<64x1xi32>
    %c128_i32_7 = arith.constant 128 : i32
    %12 = arith.subi %c128_i32_7, %6 : i32
    %c64_i32_8 = arith.constant 64 : i32
    %13 = arith.minsi %12, %c64_i32_8 : i32
    %14 = arith.sitofp %13 : i32 to f32
    %cst_9 = arith.constant 0.000000e+00 : f32
    %15 = vector.shape_cast %11 : vector<64x1xi1> to vector<64x1xi1>
    %16 = vector.broadcast %15 : vector<64x1xi1> to vector<64x128xi1>
    %17 = vector.broadcast %cst_9 : f32 to vector<64x128xf32>
    %18 = arith.select %16, %4, %17 : vector<64x128xi1>, vector<64x128xf32>
    %cst_10 = arith.constant dense<0.000000e+00> : vector<128xf32>
    %19 = vector.multi_reduction <add>, %18, %cst_10 [0] : vector<64x128xf32> to vector<128xf32>
    %20 = vector.shape_cast %19 : vector<128xf32> to vector<1x128xf32>
    %21 = vector.broadcast %14 : f32 to vector<1x128xf32>
    %22 = arith.divf %20, %21 : vector<1x128xf32>
    %23 = vector.broadcast %22 : vector<1x128xf32> to vector<64x128xf32>
    %24 = arith.subf %4, %23 : vector<64x128xf32>
    %cst_11 = arith.constant 0.000000e+00 : f32
    %25 = vector.shape_cast %11 : vector<64x1xi1> to vector<64x1xi1>
    %26 = vector.broadcast %25 : vector<64x1xi1> to vector<64x128xi1>
    %27 = vector.broadcast %cst_11 : f32 to vector<64x128xf32>
    %28 = arith.select %26, %24, %27 : vector<64x128xi1>, vector<64x128xf32>
    %29 = arith.mulf %28, %28 : vector<64x128xf32>
    %cst_12 = arith.constant dense<0.000000e+00> : vector<128xf32>
    %30 = vector.multi_reduction <add>, %29, %cst_12 [0] : vector<64x128xf32> to vector<128xf32>
    %31 = vector.shape_cast %30 : vector<128xf32> to vector<1x128xf32>
    %32 = tpu.iota {dimensions = array<i32: 0>} : vector<8x1xi32>
    %c0_i32 = arith.constant 0 : i32
    %33 = vector.broadcast %c0_i32 : i32 to vector<8x1xi32>
    %34 = arith.cmpi eq, %32, %33 : vector<8x1xi32>
    %c1_i32 = arith.constant 1 : i32
    %35 = vector.broadcast %c1_i32 : i32 to vector<8x1xi32>
    %36 = arith.cmpi eq, %32, %35 : vector<8x1xi32>
    %cst_13 = arith.constant 0.000000e+00 : f32
    %37 = vector.shape_cast %36 : vector<8x1xi1> to vector<8x1xi1>
    %38 = vector.broadcast %37 : vector<8x1xi1> to vector<8x128xi1>
    %39 = vector.shape_cast %31 : vector<1x128xf32> to vector<1x128xf32>
    %40 = vector.broadcast %39 : vector<1x128xf32> to vector<8x128xf32>
    %41 = vector.broadcast %cst_13 : f32 to vector<8x128xf32>
    %42 = arith.select %38, %40, %41 : vector<8x128xi1>, vector<8x128xf32>
    %43 = vector.shape_cast %34 : vector<8x1xi1> to vector<8x1xi1>
    %44 = vector.broadcast %43 : vector<8x1xi1> to vector<8x128xi1>
    %45 = vector.shape_cast %20 : vector<1x128xf32> to vector<1x128xf32>
    %46 = vector.broadcast %45 : vector<1x128xf32> to vector<8x128xf32>
    %47 = arith.select %44, %46, %42 : vector<8x128xi1>, vector<8x128xf32>
    %c0_14 = arith.constant 0 : index
    %c0_15 = arith.constant 0 : index
    %48 = vector.load %arg5[%c0_14, %c0_15] : memref<8x128xf32, #tpu.memory_space<vmem>>, vector<8x128xf32>
    tpu.vector_store %arg5[%c0_14, %c0_15], %47 {strides = array<i32>} : memref<8x128xf32, #tpu.memory_space<vmem>>, vector<8x128xf32>,
    return
  }
  func.func @transform_0(%arg0: i32) -> (i32, i32) {
    %c0_i32 = arith.constant 0 : i32
    %c0_i32_0 = arith.constant 0 : i32
    return %arg0, %c0_i32 : i32, i32
  }
  func.func @transform_1(%arg0: i32) -> (i32, i32) {
    %c0_i32 = arith.constant 0 : i32
    %c0_i32_0 = arith.constant 0 : i32
    %c0_i32_1 = arith.constant 0 : i32
    return %c0_i32, %c0_i32_0 : i32, i32
  }
  func.func @transform_2(%arg0: i32) -> (i32, i32) {
    %c0_i32 = arith.constant 0 : i32
    %c0_i32_0 = arith.constant 0 : i32
    return %arg0, %c0_i32 : i32, i32
  }
  func.func @transform_3(%arg0: i32) -> (i32, i32) {
    %c0_i32 = arith.constant 0 : i32
    %c0_i32_0 = arith.constant 0 : i32
    return %arg0, %c0_i32 : i32, i32
  }
  func.func @transform_4(%arg0: i32) -> (i32, i32) {
    %c0_i32 = arith.constant 0 : i32
    %c0_i32_0 = arith.constant 0 : i32
    return %arg0, %c0_i32 : i32, i32
  }
}

</mosaic_0001>

<llo_original>
// kernel: tpu_custom_call.1
$region0: #{tpu_custom_call.1}
  #allocation0 [shape = 'u32[]', space=smem, size = 0x4, offset = 0x4, fixed_abs, tag = 'smem constant byte address 0x4 - core index']
  #allocation1 [shape = 'u32[72,128]{1,0:T(1,128)}', space=vmem, size = 0x9000, scoped, tag = 'internal scratch']
  %s0 = inlined_call_operand.hbm [shape: f32[16,128], index: 0, kind: input, shape index: {}]
  %s1 = inlined_call_operand.hbm [shape: f32[8,128], index: 1, kind: input, shape index: {}]
  %s2 = inlined_call_operand.hbm [shape: f32[16,128], index: 2, kind: output, shape index: {}]
  %s3 = sld [smem:[#allocation0]]
  $region49: #{tpu_custom_call.1} parent=0
    _
  %s5 = ssub.s32 1, %s3
  %s6 = scalar_select 0, %s5, %s3
  $region1: #{tpu_custom_call.1} parent=0
    #allocation2 [shape = 'u8[8192]{0}', space=vmem, size = 0x2000, scoped, tag = 'input window, operand 0']
    #allocation3 [shape = 's32[2]{0}', space=sflag, size = 0x8, scoped, tag = 'scoped memory for tpu_custom_call.1']
    #allocation4 [shape = 's32[2]{0}', space=sflag, size = 0x8, scoped, tag = 'scoped memory for tpu_custom_call.1']
    #allocation5 [shape = 'u8[4096]{0}', space=vmem, size = 0x1000, scoped, tag = 'input window, operand 1, single buffered']
    #allocation6 [shape = 's32[1]{0}', space=sflag, size = 0x4, scoped, tag = 'scoped memory for tpu_custom_call.1']
    #allocation7 [shape = 'u8[8192]{0}', space=vmem, size = 0x2000, scoped, tag = 'output window, operand 0']
    %7 = vsyncpa [#allocation3], 0
    %s8 = scalar_lea.sflag [#allocation3], 1
    %9 = vsyncpa %s8, 0
    %10 = vsyncpa [#allocation6], 0
    %11 = vsyncpa [#allocation4], 0
    %s12 = scalar_lea.sflag [#allocation4], 1
    %13 = vsyncpa %s12, 0
    loop: start=0, step=1, limit=4
    $region2: #{tpu_custom_call.1} parent=1 // loop_pre_header
      _
    $region3: #{tpu_custom_call.1} parent=1 // loop_header
      %s15 = sphi 0, %s19
      %p16 = scmp.ge.s32.totalorder %s15, 4
      %s25 = sphi 0, %s27
      %s28 = sphi 0, %s25
      %s29 = sphi 0, %s28
      %s45 = sphi 0, %s29
      %s49 = sphi 0, %s49
      %s51 = sphi 0, %s49
      %s52 = sphi 0, %s51
      %s66 = sphi 0, %s52
      %s72 = sphi 0, %s74
      %s75 = sphi 0, %s72
      %s76 = sphi 0, %s75
      %s92 = sphi 0, %s76
    $region4: #{tpu_custom_call.1} parent=1 // loop_header_branch
      %18 = sbr.rel (%p16) target = $region8
    $region5: #{tpu_custom_call.1} parent=1 // loop_body
      %s20 = ssub.s32 %s15, 1
      %s21 = ssub.s32 %s15, 2
      %s22 = sadd.s32 %s15, 1
      %s23 = ssub.s32 %s15, %s22
      %p24 = scmp.eq.s32.totalorder %s23, 0
      %s26 = sadd.s32 %s25, 1
      %s27 = scalar_select %p24, %s25, %s26
      %p30 = pneg %p24
      %p31 = scmp.eq.s32.totalorder %s15, 1
      %p32 = por %p30, %p31
      %p33 = scmp.ne.s32.totalorder %s25, %s28
      %p34 = scmp.eq.s32.totalorder %s15, 0
      %p35 = por %p33, %p34
      %p36 = scmp.ne.s32.totalorder %s25, %s28
      %p37 = scmp.eq.s32.totalorder %s20, 1
      %p38 = por %p36, %p37
      %p39 = scmp.ne.s32.totalorder %s28, %s29
      %p40 = scmp.eq.s32.totalorder %s20, 0
      %p41 = por %p39, %p40
      %p42 = scmp.ne.s32.totalorder %s28, %s29
      %p43 = scmp.eq.s32.totalorder %s21, 1
      %p44 = por %p42, %p43
      %p46 = scmp.ne.s32.totalorder %s29, %s45
      %p47 = scmp.eq.s32.totalorder %s21, 0
      %p48 = por %p46, %p47
      %s50 = sadd.s32 %s49, 1
      %p53 = scmp.eq.s32.totalorder %s15, 1
      %p54 = scmp.ne.s32.totalorder %s49, %s51
      %p55 = scmp.eq.s32.totalorder %s15, 0
      %p56 = por %p54, %p55
      %p57 = scmp.ne.s32.totalorder %s49, %s51
      %p58 = scmp.eq.s32.totalorder %s20, 1
      %p59 = por %p57, %p58
      %p60 = scmp.ne.s32.totalorder %s51, %s52
      %p61 = scmp.eq.s32.totalorder %s20, 0
      %p62 = por %p60, %p61
      %p63 = scmp.ne.s32.totalorder %s51, %s52
      %p64 = scmp.eq.s32.totalorder %s21, 1
      %p65 = por %p63, %p64
      %p67 = scmp.ne.s32.totalorder %s52, %s66
      %p68 = scmp.eq.s32.totalorder %s21, 0
      %p69 = por %p67, %p68
      %s70 = ssub.s32 %s15, %s22
      %p71 = scmp.eq.s32.totalorder %s70, 0
      %s73 = sadd.s32 %s72, 1
      %s74 = scalar_select %p71, %s72, %s73
      %p77 = pneg %p71
      %p78 = scmp.eq.s32.totalorder %s15, 1
      %p79 = por %p77, %p78
      %p80 = scmp.ne.s32.totalorder %s72, %s75
      %p81 = scmp.eq.s32.totalorder %s15, 0
      %p82 = por %p80, %p81
      %p83 = scmp.ne.s32.totalorder %s72, %s75
      %p84 = scmp.eq.s32.totalorder %s20, 1
      %p85 = por %p83, %p84
      %p86 = scmp.ne.s32.totalorder %s75, %s76
      %p87 = scmp.eq.s32.totalorder %s20, 0
      %p88 = por %p86, %p87
      %p89 = scmp.ne.s32.totalorder %s75, %s76
      %p90 = scmp.eq.s32.totalorder %s21, 1
      %p91 = por %p89, %p90
      %p93 = scmp.ne.s32.totalorder %s76, %s92
      %p94 = scmp.eq.s32.totalorder %s21, 0
      %p95 = por %p93, %p94
      %p96 = scmp.le.s32.totalorder 1, %s15
      %p97 = scmp.lt.s32.totalorder %s15, 3
      %p98 = pnand %p96, %p97
      %p99 = pneg %p98
      // Predicated region
      $region9: #{tpu_custom_call.1} parent=5 // pred_check
        _
      $region10: #{tpu_custom_call.1} parent=5 // pred_check_branch
        %101 = sbr.rel (%p98) target = $region12
      $region11: #{tpu_custom_call.1} parent=5 // pred_region
        %s102 = ssub.s32 %s15, 1
        // Predicated region
        $region13: #{tpu_custom_call.1} parent=11 // pred_check
          %p103 = pneg %p62
        $region14: #{tpu_custom_call.1} parent=11 // pred_check_branch
          %105 = sbr.rel (%p103) target = $region16
        $region15: #{tpu_custom_call.1} parent=11 // pred_region
          %107 = vsyncadd [#allocation6], 0
          %s109 = sshll.u32 %s1, 4
          %s110 = int_to_ptr.hbm [resolvable:$true] %s109
          %s111 = sshll.u32 [#allocation5], 4
          %s112 = int_to_ptr.vmem [resolvable:$true] %s111
          %114 = dma.hbm_to_vmem [thread:$0]  %s110, 128, %s112, [#allocation6]
        $region16: #{tpu_custom_call.1} parent=11 // pred_fallthru
          _
      $region12: #{tpu_custom_call.1} parent=5 // pred_fallthru
        _
      %p115 = scmp.lt.s32.totalorder %s15, 2
      // Predicated region
      $region17: #{tpu_custom_call.1} parent=5 // pred_check
        %p116 = pneg %p115
      $region18: #{tpu_custom_call.1} parent=5 // pred_check_branch
        %118 = sbr.rel (%p116) target = $region20
      $region19: #{tpu_custom_call.1} parent=5 // pred_region
        // Predicated region
        $region21: #{tpu_custom_call.1} parent=19 // pred_check
          %p119 = pneg %p35
        $region22: #{tpu_custom_call.1} parent=19 // pred_check_branch
          %121 = sbr.rel (%p119) target = $region24
        $region23: #{tpu_custom_call.1} parent=19 // pred_region
          %s122 = sand.u32 %s25, 1
          %s123 = scalar_lea.sflag [#allocation3], %s122
          %s124 = sand.u32 %s25, 1
          %s125 = smul.addr %s124, 8
          %s126 = scalar_lea.vmem [#allocation2], %s125
          %128 = vsyncadd %s123, 0
          %s129 = smul.addr %s15, 8
          %s130 = scalar_lea.hbm %s0, %s129
          %s132 = sshll.u32 %s130, 4
          %s133 = int_to_ptr.hbm [resolvable:$true] %s132
          %s134 = sshll.u32 %s126, 4
          %s135 = int_to_ptr.vmem [resolvable:$true] %s134
          %137 = dma.hbm_to_vmem [thread:$0]  %s133, 128, %s135, %s123
        $region24: #{tpu_custom_call.1} parent=19 // pred_fallthru
          _
      $region20: #{tpu_custom_call.1} parent=5 // pred_fallthru
        _
      %p138 = scmp.le.s32.totalorder 1, %s15
      %p139 = scmp.lt.s32.totalorder %s15, 3
      %p140 = pnand %p138, %p139
      %p141 = pneg %p140
      // Predicated region
      $region25: #{tpu_custom_call.1} parent=5 // pred_check
        _
      $region26: #{tpu_custom_call.1} parent=5 // pred_check_branch
        %143 = sbr.rel (%p140) target = $region28
      $region27: #{tpu_custom_call.1} parent=5 // pred_region
        %s144 = ssub.s32 %s15, 1
        %s145 = sand.u32 %s28, 1
        %s146 = scalar_lea.sflag [#allocation3], %s145
        %s147 = sand.u32 %s28, 1
        %s148 = smul.addr %s147, 8
        %s149 = scalar_lea.vmem [#allocation2], %s148
        // Predicated region
        $region29: #{tpu_custom_call.1} parent=27 // pred_check
          %p150 = pneg %p41
        $region30: #{tpu_custom_call.1} parent=27 // pred_check_branch
          %152 = sbr.rel (%p150) target = $region32
        $region31: #{tpu_custom_call.1} parent=27 // pred_region
          %154 = dma.done %s146, 128
        $region32: #{tpu_custom_call.1} parent=27 // pred_fallthru
          _
        // Predicated region
        $region33: #{tpu_custom_call.1} parent=27 // pred_check
          %p155 = pneg %p62
        $region34: #{tpu_custom_call.1} parent=27 // pred_check_branch
          %157 = sbr.rel (%p155) target = $region36
        $region35: #{tpu_custom_call.1} parent=27 // pred_region
          %159 = dma.done [#allocation6], 128
        $region36: #{tpu_custom_call.1} parent=27 // pred_fallthru
          _
        %s160 = sand.u32 %s28, 1
        %s161 = scalar_lea.sflag [#allocation3], %s160
        %s162 = sand.u32 %s28, 1
        %s163 = smul.addr %s162, 8
        %s164 = scalar_lea.vmem [#allocation2], %s163
        %p165 = pneg %p41
        %p166 = pneg %p38
        %p167 = pneg %p62
        %p168 = pneg %p59
        %p169 = pneg %p88
        %p170 = pneg %p85
        %s171 = sand.u32 %s75, 1
        %s172 = scalar_lea.sflag [#allocation4], %s171
        %s173 = sand.u32 %s75, 1
        %s174 = smul.addr %s173, 8
        %s175 = scalar_lea.vmem [#allocation7], %s174
        %v176 = vld [vmem:[%s149] sm:$0xff]
        %v177 = vld [vmem:[#allocation5] sm:$0xff]
        %v178 = vadd.f32 %v176, %v177
        %179 = vst [vmem:[%s175] sm:$0xff] %v178
        %s180 = sand.u32 %s75, 1
        %s181 = scalar_lea.sflag [#allocation4], %s180
        %s182 = sand.u32 %s75, 1
        %s183 = smul.addr %s182, 8
        %s184 = scalar_lea.vmem [#allocation7], %s183
        // Predicated region
        $region37: #{tpu_custom_call.1} parent=27 // pred_check
          %p185 = pneg %p85
        $region38: #{tpu_custom_call.1} parent=27 // pred_check_branch
          %187 = sbr.rel (%p185) target = $region40
        $region39: #{tpu_custom_call.1} parent=27 // pred_region
          %189 = vsyncadd %s181, 0
          %s190 = smul.addr %s20, 8
          %s191 = scalar_lea.hbm %s2, %s190
          %s193 = sshll.u32 %s184, 4
          %s194 = int_to_ptr.vmem [resolvable:$true] %s193
          %s195 = sshll.u32 %s191, 4
          %s196 = int_to_ptr.hbm [resolvable:$true] %s195
          %198 = dma.vmem_to_hbm [thread:$0]  %s194, 128, %s196, %s181
        $region40: #{tpu_custom_call.1} parent=27 // pred_fallthru
          _
      $region28: #{tpu_custom_call.1} parent=5 // pred_fallthru
        _
      %p199 = scmp.le.s32.totalorder 2, %s15
      // Predicated region
      $region41: #{tpu_custom_call.1} parent=5 // pred_check
        %p200 = pneg %p199
      $region42: #{tpu_custom_call.1} parent=5 // pred_check_branch
        %202 = sbr.rel (%p200) target = $region44
      $region43: #{tpu_custom_call.1} parent=5 // pred_region
        %s203 = ssub.s32 %s15, 2
        // Predicated region
        $region45: #{tpu_custom_call.1} parent=43 // pred_check
          %p204 = pneg %p91
        $region46: #{tpu_custom_call.1} parent=43 // pred_check_branch
          %206 = sbr.rel (%p204) target = $region48
        $region47: #{tpu_custom_call.1} parent=43 // pred_region
          %s207 = sand.u32 %s76, 1
          %s208 = scalar_lea.sflag [#allocation4], %s207
          %s209 = sand.u32 %s76, 1
          %s210 = smul.addr %s209, 8
          %s211 = scalar_lea.vmem [#allocation7], %s210
          %213 = dma.done %s208, 128
        $region48: #{tpu_custom_call.1} parent=43 // pred_fallthru
          _
      $region44: #{tpu_custom_call.1} parent=5 // pred_fallthru
        _
    $region6: #{tpu_custom_call.1} parent=1 // loop_footer
      %s19 = sadd.s32 1, %s15
    $region7: #{tpu_custom_call.1} parent=1 // loop_footer_branch
      %14 = sbr.rel target = $region3
    $region8: #{tpu_custom_call.1} parent=1 // loop_exit
      _
    %214 = vsyncpa [#allocation3], 1
    %s215 = scalar_lea.sflag [#allocation3], 1
    %216 = vsyncpa %s215, 1
    %217 = vsyncpa [#allocation6], 1
    %218 = vsyncpa [#allocation4], 1
    %s219 = scalar_lea.sflag [#allocation4], 1
    %220 = vsyncpa %s219, 1

// kernel: res_block_forward.3
$region0: #{res_block_forward.3}
  #allocation0 [shape = 'u32[]', space=smem, size = 0x4, offset = 0x4, fixed_abs, tag = 'smem constant byte address 0x4 - core index']
  #allocation1 [shape = 'u32[72,128]{1,0:T(1,128)}', space=vmem, size = 0x9000, scoped, tag = 'internal scratch']
  %s0 = inlined_call_operand.vmem [shape: bf16[128,128], index: 0, kind: input, shape index: {}]
  %s1 = inlined_call_operand.vmem [shape: bf16[128,128], index: 1, kind: input, shape index: {}]
  %s2 = inlined_call_operand.vmem [shape: bf16[128,128], index: 2, kind: input, shape index: {}]
  %s3 = inlined_call_operand.vmem [shape: bf16[128,128], index: 3, kind: input, shape index: {}]
  %s4 = inlined_call_operand.vmem [shape: f32[1,128], index: 4, kind: input, shape index: {}]
  %s5 = inlined_call_operand.vmem [shape: bf16[128,128], index: 5, kind: output, shape index: {0}]
  %s6 = inlined_call_operand.vmem [shape: f32[128,128], index: 6, kind: output, shape index: {1}]
  %7 = xla_tuple %s5, %s6
  %s8 = sld [smem:[#allocation0]]
  $region61: #{res_block_forward.3} parent=0
    _
  %s10 = ssub.s32 1, %s8
  %s11 = scalar_select 0, %s10, %s8
  loop: start=0, step=1, limit=4
  $region2: #{res_block_forward.3} parent=0 // loop_pre_header
    _
  $region3: #{res_block_forward.3} parent=0 // loop_header
    %s13 = sphi 0, %s17
    %p14 = scmp.ge.s32.totalorder %s13, 4
    %s23 = sphi 0, %s25
    %s26 = sphi 0, %s23
    %s27 = sphi 0, %s26
    %s43 = sphi 0, %s27
    %s47 = sphi 0, %s47
    %s49 = sphi 0, %s47
    %s50 = sphi 0, %s49
    %s64 = sphi 0, %s50
    %s68 = sphi 0, %s68
    %s70 = sphi 0, %s68
    %s71 = sphi 0, %s70
    %s85 = sphi 0, %s71
    %s89 = sphi 0, %s89
    %s91 = sphi 0, %s89
    %s92 = sphi 0, %s91
    %s106 = sphi 0, %s92
    %s110 = sphi 0, %s110
    %s112 = sphi 0, %s110
    %s113 = sphi 0, %s112
    %s127 = sphi 0, %s113
    %s133 = sphi 0, %s135
    %s136 = sphi 0, %s133
    %s137 = sphi 0, %s136
    %s153 = sphi 0, %s137
    %s159 = sphi 0, %s161
    %s162 = sphi 0, %s159
    %s163 = sphi 0, %s162
    %s179 = sphi 0, %s163
  $region4: #{res_block_forward.3} parent=0 // loop_header_branch
    %16 = sbr.rel (%p14) target = $region8
  $region5: #{res_block_forward.3} parent=0 // loop_body
    %s18 = ssub.s32 %s13, 1
    %s19 = ssub.s32 %s13, 2
    %s20 = sadd.s32 %s13, 1
    %s21 = ssub.s32 %s13, %s20
    %p22 = scmp.eq.s32.totalorder %s21, 0
    %s24 = sadd.s32 %s23, 1
    %s25 = scalar_select %p22, %s23, %s24
    %p28 = pneg %p22
    %p29 = scmp.eq.s32.totalorder %s13, 1
    %p30 = por %p28, %p29
    %p31 = scmp.ne.s32.totalorder %s23, %s26
    %p32 = scmp.eq.s32.totalorder %s13, 0
    %p33 = por %p31, %p32
    %p34 = scmp.ne.s32.totalorder %s23, %s26
    %p35 = scmp.eq.s32.totalorder %s18, 1
    %p36 = por %p34, %p35
    %p37 = scmp.ne.s32.totalorder %s26, %s27
    %p38 = scmp.eq.s32.totalorder %s18, 0
    %p39 = por %p37, %p38
    %p40 = scmp.ne.s32.totalorder %s26, %s27
    %p41 = scmp.eq.s32.totalorder %s19, 1
    %p42 = por %p40, %p41
    %p44 = scmp.ne.s32.totalorder %s27, %s43
    %p45 = scmp.eq.s32.totalorder %s19, 0
    %p46 = por %p44, %p45
    %s48 = sadd.s32 %s47, 1
    %p51 = scmp.eq.s32.totalorder %s13, 1
    %p52 = scmp.ne.s32.totalorder %s47, %s49
    %p53 = scmp.eq.s32.totalorder %s13, 0
    %p54 = por %p52, %p53
    %p55 = scmp.ne.s32.totalorder %s47, %s49
    %p56 = scmp.eq.s32.totalorder %s18, 1
    %p57 = por %p55, %p56
    %p58 = scmp.ne.s32.totalorder %s49, %s50
    %p59 = scmp.eq.s32.totalorder %s18, 0
    %p60 = por %p58, %p59
    %p61 = scmp.ne.s32.totalorder %s49, %s50
    %p62 = scmp.eq.s32.totalorder %s19, 1
    %p63 = por %p61, %p62
    %p65 = scmp.ne.s32.totalorder %s50, %s64
    %p66 = scmp.eq.s32.totalorder %s19, 0
    %p67 = por %p65, %p66
    %s69 = sadd.s32 %s68, 1
    %p72 = scmp.eq.s32.totalorder %s13, 1
    %p73 = scmp.ne.s32.totalorder %s68, %s70
    %p74 = scmp.eq.s32.totalorder %s13, 0
    %p75 = por %p73, %p74
    %p76 = scmp.ne.s32.totalorder %s68, %s70
    %p77 = scmp.eq.s32.totalorder %s18, 1
    %p78 = por %p76, %p77
    %p79 = scmp.ne.s32.totalorder %s70, %s71
    %p80 = scmp.eq.s32.totalorder %s18, 0
    %p81 = por %p79, %p80
    %p82 = scmp.ne.s32.totalorder %s70, %s71
    %p83 = scmp.eq.s32.totalorder %s19, 1
    %p84 = por %p82, %p83
    %p86 = scmp.ne.s32.totalorder %s71, %s85
    %p87 = scmp.eq.s32.totalorder %s19, 0
    %p88 = por %p86, %p87
    %s90 = sadd.s32 %s89, 1
    %p93 = scmp.eq.s32.totalorder %s13, 1
    %p94 = scmp.ne.s32.totalorder %s89, %s91
    %p95 = scmp.eq.s32.totalorder %s13, 0
    %p96 = por %p94, %p95
    %p97 = scmp.ne.s32.totalorder %s89, %s91
    %p98 = scmp.eq.s32.totalorder %s18, 1
    %p99 = por %p97, %p98
    %p100 = scmp.ne.s32.totalorder %s91, %s92
    %p101 = scmp.eq.s32.totalorder %s18, 0
    %p102 = por %p100, %p101
    %p103 = scmp.ne.s32.totalorder %s91, %s92
    %p104 = scmp.eq.s32.totalorder %s19, 1
    %p105 = por %p103, %p104
    %p107 = scmp.ne.s32.totalorder %s92, %s106
    %p108 = scmp.eq.s32.totalorder %s19, 0
    %p109 = por %p107, %p108
    %s111 = sadd.s32 %s110, 1
    %p114 = scmp.eq.s32.totalorder %s13, 1
    %p115 = scmp.ne.s32.totalorder %s110, %s112
    %p116 = scmp.eq.s32.totalorder %s13, 0
    %p117 = por %p115, %p116
    %p118 = scmp.ne.s32.totalorder %s110, %s112
    %p119 = scmp.eq.s32.totalorder %s18, 1
    %p120 = por %p118, %p119
    %p121 = scmp.ne.s32.totalorder %s112, %s113
    %p122 = scmp.eq.s32.totalorder %s18, 0
    %p123 = por %p121, %p122
    %p124 = scmp.ne.s32.totalorder %s112, %s113
    %p125 = scmp.eq.s32.totalorder %s19, 1
    %p126 = por %p124, %p125
    %p128 = scmp.ne.s32.totalorder %s113, %s127
    %p129 = scmp.eq.s32.totalorder %s19, 0
    %p130 = por %p128, %p129
    %s131 = ssub.s32 %s13, %s20
    %p132 = scmp.eq.s32.totalorder %s131, 0
    %s134 = sadd.s32 %s133, 1
    %s135 = scalar_select %p132, %s133, %s134
    %p138 = pneg %p132
    %p139 = scmp.eq.s32.totalorder %s13, 1
    %p140 = por %p138, %p139
    %p141 = scmp.ne.s32.totalorder %s133, %s136
    %p142 = scmp.eq.s32.totalorder %s13, 0
    %p143 = por %p141, %p142
    %p144 = scmp.ne.s32.totalorder %s133, %s136
    %p145 = scmp.eq.s32.totalorder %s18, 1
    %p146 = por %p144, %p145
    %p147 = scmp.ne.s32.totalorder %s136, %s137
    %p148 = scmp.eq.s32.totalorder %s18, 0
    %p149 = por %p147, %p148
    %p150 = scmp.ne.s32.totalorder %s136, %s137
    %p151 = scmp.eq.s32.totalorder %s19, 1
    %p152 = por %p150, %p151
    %p154 = scmp.ne.s32.totalorder %s137, %s153
    %p155 = scmp.eq.s32.totalorder %s19, 0
    %p156 = por %p154, %p155
    %s157 = ssub.s32 %s13, %s20
    %p158 = scmp.eq.s32.totalorder %s157, 0
    %s160 = sadd.s32 %s159, 1
    %s161 = scalar_select %p158, %s159, %s160
    %p164 = pneg %p158
    %p165 = scmp.eq.s32.totalorder %s13, 1
    %p166 = por %p164, %p165
    %p167 = scmp.ne.s32.totalorder %s159, %s162
    %p168 = scmp.eq.s32.totalorder %s13, 0
    %p169 = por %p167, %p168
    %p170 = scmp.ne.s32.totalorder %s159, %s162
    %p171 = scmp.eq.s32.totalorder %s18, 1
    %p172 = por %p170, %p171
    %p173 = scmp.ne.s32.totalorder %s162, %s163
    %p174 = scmp.eq.s32.totalorder %s18, 0
    %p175 = por %p173, %p174
    %p176 = scmp.ne.s32.totalorder %s162, %s163
    %p177 = scmp.eq.s32.totalorder %s19, 1
    %p178 = por %p176, %p177
    %p180 = scmp.ne.s32.totalorder %s163, %s179
    %p181 = scmp.eq.s32.totalorder %s19, 0
    %p182 = por %p180, %p181
    %p183 = scmp.le.s32.totalorder 1, %s13
    %p184 = scmp.lt.s32.totalorder %s13, 3
    %p185 = pnand %p183, %p184
    %p186 = pneg %p185
    // Predicated region
    $region9: #{res_block_forward.3} parent=5 // pred_check
      _
    $region10: #{res_block_forward.3} parent=5 // pred_check_branch
      %188 = sbr.rel (%p185) target = $region12
    $region11: #{res_block_forward.3} parent=5 // pred_region
      %s189 = ssub.s32 %s13, 1
      // Predicated region
      $region13: #{res_block_forward.3} parent=11 // pred_check
        %p190 = pneg %p60
      $region14: #{res_block_forward.3} parent=11 // pred_check_branch
        %192 = sbr.rel (%p190) target = $region16
      $region15: #{res_block_forward.3} parent=11 // pred_region
        _
      $region16: #{res_block_forward.3} parent=11 // pred_fallthru
        _
      // Predicated region
      $region17: #{res_block_forward.3} parent=11 // pred_check
        %p193 = pneg %p81
      $region18: #{res_block_forward.3} parent=11 // pred_check_branch
        %195 = sbr.rel (%p193) target = $region20
      $region19: #{res_block_forward.3} parent=11 // pred_region
        _
      $region20: #{res_block_forward.3} parent=11 // pred_fallthru
        _
      // Predicated region
      $region21: #{res_block_forward.3} parent=11 // pred_check
        %p196 = pneg %p102
      $region22: #{res_block_forward.3} parent=11 // pred_check_branch
        %198 = sbr.rel (%p196) target = $region24
      $region23: #{res_block_forward.3} parent=11 // pred_region
        _
      $region24: #{res_block_forward.3} parent=11 // pred_fallthru
        _
      // Predicated region
      $region25: #{res_block_forward.3} parent=11 // pred_check
        %p199 = pneg %p123
      $region26: #{res_block_forward.3} parent=11 // pred_check_branch
        %201 = sbr.rel (%p199) target = $region28
      $region27: #{res_block_forward.3} parent=11 // pred_region
        _
      $region28: #{res_block_forward.3} parent=11 // pred_fallthru
        _
    $region12: #{res_block_forward.3} parent=5 // pred_fallthru
      _
    %p202 = scmp.lt.s32.totalorder %s13, 2
    // Predicated region
    $region29: #{res_block_forward.3} parent=5 // pred_check
      %p203 = pneg %p202
    $region30: #{res_block_forward.3} parent=5 // pred_check_branch
      %205 = sbr.rel (%p203) target = $region32
    $region31: #{res_block_forward.3} parent=5 // pred_region
      // Predicated region
      $region33: #{res_block_forward.3} parent=31 // pred_check
        %p206 = pneg %p33
      $region34: #{res_block_forward.3} parent=31 // pred_check_branch
        %208 = sbr.rel (%p206) target = $region36
      $region35: #{res_block_forward.3} parent=31 // pred_region
        %s209 = smul.u32 8, %s13
        %p210 = scmp.lt.s32.totalorder %s209, 15
        %s211 = scalar_select %p210, %s209, 15
        %s212 = smul.addr %s211, 4
        %s213 = scalar_lea.vmem %s0, %s212
        %s214 = smul.u32 8, %s13
      $region36: #{res_block_forward.3} parent=31 // pred_fallthru
        _
    $region32: #{res_block_forward.3} parent=5 // pred_fallthru
      _
    %p215 = scmp.le.s32.totalorder 1, %s13
    %p216 = scmp.lt.s32.totalorder %s13, 3
    %p217 = pnand %p215, %p216
    %p218 = pneg %p217
    // Predicated region
    $region37: #{res_block_forward.3} parent=5 // pred_check
      _
    $region38: #{res_block_forward.3} parent=5 // pred_check_branch
      %220 = sbr.rel (%p217) target = $region40
    $region39: #{res_block_forward.3} parent=5 // pred_region
      %s221 = ssub.s32 %s13, 1
      %s222 = smul.u32 8, %s18
      %p223 = scmp.lt.s32.totalorder %s222, 15
      %s224 = scalar_select %p223, %s222, 15
      %s225 = smul.addr %s224, 4
      %s226 = scalar_lea.vmem %s0, %s225
      %p227 = pneg %p39
      %p228 = pneg %p36
      %p229 = pneg %p60
      %p230 = pneg %p57
      %p231 = pneg %p81
      %p232 = pneg %p78
      %p233 = pneg %p102
      %p234 = pneg %p99
      %p235 = pneg %p123
      %p236 = pneg %p120
      %p237 = pneg %p149
      %p238 = pneg %p146
      %s239 = smul.u32 8, %s18
      %p240 = scmp.lt.s32.totalorder %s239, 15
      %s241 = scalar_select %p240, %s239, 15
      %s242 = smul.addr %s241, 4
      %s243 = scalar_lea.vmem %s5, %s242
      %p244 = pneg %p175
      %p245 = pneg %p172
      %s246 = smul.u32 8, %s18
      %p247 = scmp.lt.s32.totalorder %s246, 15
      %s248 = scalar_select %p247, %s246, 15
      %s249 = smul.addr %s248, 8
      %s250 = scalar_lea.vmem %s6, %s249
      %s251 = smul.u32 8, %s18
      %p252 = scmp.lt.s32.totalorder %s251, 15
      %s253 = scalar_select %p252, %s251, 15
      %s254 = smul.addr %s253, 4
      %s255 = scalar_lea.vmem %s0, %s254
      %s256 = smul.u32 8, %s18
      %s257 = smul.u32 8, %s18
      %p258 = scmp.lt.s32.totalorder %s257, 15
      %s259 = scalar_select %p258, %s257, 15
      %s260 = smul.addr %s259, 4
      %s261 = scalar_lea.vmem %s5, %s260
      %s262 = smul.u32 8, %s18
      %s263 = smul.u32 8, %s18
      %p264 = scmp.lt.s32.totalorder %s263, 15
      %s265 = scalar_select %p264, %s263, 15
      %s266 = smul.addr %s265, 8
      %s267 = scalar_lea.vmem %s6, %s266
      %s268 = smul.u32 8, %s18
      %v269 = vld [vmem:[%s255] sm:$0xf]
      %v270 = vld [vmem:[%s255 + $0x4] sm:$0xf]
      %v271 = vld [vmem:[%s255 + $0x8] sm:$0xf]
      %v272 = vld [vmem:[%s255 + $0xc] sm:$0xf]
      %v273 = vld [vmem:[%s255 + $0x10] sm:$0xf]
      %v274 = vld [vmem:[%s255 + $0x14] sm:$0xf]
      %v275 = vld [vmem:[%s255 + $0x18] sm:$0xf]
      %v276 = vld [vmem:[%s255 + $0x1c] sm:$0xf]
      %v277 = vld [vmem:[%s1] sm:$0xf]
      %v278 = vld [vmem:[%s1 + $0x4] sm:$0xf]
      %v279 = vld [vmem:[%s1 + $0x8] sm:$0xf]
      %v280 = vld [vmem:[%s1 + $0xc] sm:$0xf]
      %v281 = vld [vmem:[%s1 + $0x10] sm:$0xf]
      %v282 = vld [vmem:[%s1 + $0x14] sm:$0xf]
      %v283 = vld [vmem:[%s1 + $0x18] sm:$0xf]
      %v284 = vld [vmem:[%s1 + $0x1c] sm:$0xf]
      %v285 = vld [vmem:[%s1 + $0x20] sm:$0xf]
      %v286 = vld [vmem:[%s1 + $0x24] sm:$0xf]
      %v287 = vld [vmem:[%s1 + $0x28] sm:$0xf]
      %v288 = vld [vmem:[%s1 + $0x2c] sm:$0xf]
      %v289 = vld [vmem:[%s1 + $0x30] sm:$0xf]
      %v290 = vld [vmem:[%s1 + $0x34] sm:$0xf]
      %v291 = vld [vmem:[%s1 + $0x38] sm:$0xf]
      %v292 = vld [vmem:[%s1 + $0x3c] sm:$0xf]
      %v301 = vunpack.c.l.b16 %v269
      %v302 = vunpack.c.l.b16 %v270
      %v303 = vunpack.c.l.b16 %v271
      %v304 = vunpack.c.l.b16 %v272
      %v305 = vunpack.c.l.b16 %v273
      %v306 = vunpack.c.l.b16 %v274
      %v307 = vunpack.c.l.b16 %v275
      %v308 = vunpack.c.l.b16 %v276
      %v309 = vpack.c.b16 %v302, %v301
      %v310 = vpack.c.b16 %v304, %v303
      %v311 = vpack.c.b16 %v306, %v305
      %v312 = vpack.c.b16 %v308, %v307
      %v333 = vunpack.c.l.b16 %v277
      %v334 = vunpack.c.l.b16 %v278
      %v335 = vunpack.c.l.b16 %v279
      %v336 = vunpack.c.l.b16 %v280
      %v337 = vunpack.c.l.b16 %v281
      %v338 = vunpack.c.l.b16 %v282
      %v339 = vunpack.c.l.b16 %v283
      %v340 = vunpack.c.l.b16 %v284
      %v341 = vunpack.c.l.b16 %v285
      %v342 = vunpack.c.l.b16 %v286
      %v343 = vunpack.c.l.b16 %v287
      %v344 = vunpack.c.l.b16 %v288
      %v345 = vunpack.c.l.b16 %v289
      %v346 = vunpack.c.l.b16 %v290
      %v347 = vunpack.c.l.b16 %v291
      %v348 = vunpack.c.l.b16 %v292
      %v349 = vpack.c.b16 %v334, %v333
      %v350 = vpack.c.b16 %v336, %v335
      %v351 = vpack.c.b16 %v338, %v337
      %v352 = vpack.c.b16 %v340, %v339
      %v353 = vpack.c.b16 %v342, %v341
      %v354 = vpack.c.b16 %v344, %v343
      %v355 = vpack.c.b16 %v346, %v345
      %v356 = vpack.c.b16 %v348, %v347
      %365 = vmatpush.bf16.msra.mxu0 %v356
      %366 = vmatpush.bf16.msra.mxu0 %v355
      %367 = vmatpush.bf16.msra.mxu0 %v354
      %368 = vmatpush.bf16.msra.mxu0 %v353
      %369 = vmatpush.bf16.msra.mxu0 %v352
      %370 = vmatpush.bf16.msra.mxu0 %v351
      %371 = vmatpush.bf16.msra.mxu0 %v350
      %372 = vmatpush.bf16.msra.mxu0 %v349
      %373 = vmatmul.bf16.gmra.mxu0 %v309
      %v374 = vpop.f32.mrf.mxu0
      %v375 = vadd.f32 0.0, %v374
      %v376 = vpop.f32.mrf.mxu0
      %v377 = vadd.f32 0.0, %v376
      %378 = vmatmul.bf16.gmra.mxu0 %v310
      %v379 = vpop.f32.mrf.mxu0
      %v380 = vadd.f32 0.0, %v379
      %v381 = vpop.f32.mrf.mxu0
      %v382 = vadd.f32 0.0, %v381
      %383 = vmatmul.bf16.gmra.mxu0 %v311
      %v384 = vpop.f32.mrf.mxu0
      %v385 = vadd.f32 0.0, %v384
      %v386 = vpop.f32.mrf.mxu0
      %v387 = vadd.f32 0.0, %v386
      %388 = vmatmul.bf16.gmra.mxu0 %v312
      %v389 = vpop.f32.mrf.mxu0
      %v390 = vadd.f32 0.0, %v389
      %v391 = vpop.f32.mrf.mxu0
      %v392 = vadd.f32 0.0, %v391
      %393 = vdwg.mxu0
      %v394 = vpack.c.bf16 %v377, %v375
      %v395 = vpack.c.bf16 %v382, %v380
      %v396 = vpack.c.bf16 %v387, %v385
      %v397 = vpack.c.bf16 %v392, %v390
      %v398 = vld [vmem:[%s2] sm:$0xf]
      %v399 = vld [vmem:[%s2 + $0x4] sm:$0xf]
      %v400 = vld [vmem:[%s2 + $0x8] sm:$0xf]
      %v401 = vld [vmem:[%s2 + $0xc] sm:$0xf]
      %v402 = vld [vmem:[%s2 + $0x10] sm:$0xf]
      %v403 = vld [vmem:[%s2 + $0x14] sm:$0xf]
      %v404 = vld [vmem:[%s2 + $0x18] sm:$0xf]
      %v405 = vld [vmem:[%s2 + $0x1c] sm:$0xf]
      %v406 = vld [vmem:[%s2 + $0x20] sm:$0xf]
      %v407 = vld [vmem:[%s2 + $0x24] sm:$0xf]
      %v408 = vld [vmem:[%s2 + $0x28] sm:$0xf]
      %v409 = vld [vmem:[%s2 + $0x2c] sm:$0xf]
      %v410 = vld [vmem:[%s2 + $0x30] sm:$0xf]
      %v411 = vld [vmem:[%s2 + $0x34] sm:$0xf]
      %v412 = vld [vmem:[%s2 + $0x38] sm:$0xf]
      %v413 = vld [vmem:[%s2 + $0x3c] sm:$0xf]
      %v430 = vunpack.c.l.b16 %v398
      %v431 = vunpack.c.l.b16 %v399
      %v432 = vunpack.c.l.b16 %v400
      %v433 = vunpack.c.l.b16 %v401
      %v434 = vunpack.c.l.b16 %v402
      %v435 = vunpack.c.l.b16 %v403
      %v436 = vunpack.c.l.b16 %v404
      %v437 = vunpack.c.l.b16 %v405
      %v438 = vunpack.c.l.b16 %v406
      %v439 = vunpack.c.l.b16 %v407
      %v440 = vunpack.c.l.b16 %v408
      %v441 = vunpack.c.l.b16 %v409
      %v442 = vunpack.c.l.b16 %v410
      %v443 = vunpack.c.l.b16 %v411
      %v444 = vunpack.c.l.b16 %v412
      %v445 = vunpack.c.l.b16 %v413
      %v446 = vpack.c.b16 %v431, %v430
      %v447 = vpack.c.b16 %v433, %v432
      %v448 = vpack.c.b16 %v435, %v434
      %v449 = vpack.c.b16 %v437, %v436
      %v450 = vpack.c.b16 %v439, %v438
      %v451 = vpack.c.b16 %v441, %v440
      %v452 = vpack.c.b16 %v443, %v442
      %v453 = vpack.c.b16 %v445, %v444
      %462 = vmatpush.bf16.msra.mxu0 %v453
      %463 = vmatpush.bf16.msra.mxu0 %v452
      %464 = vmatpush.bf16.msra.mxu0 %v451
      %465 = vmatpush.bf16.msra.mxu0 %v450
      %466 = vmatpush.bf16.msra.mxu0 %v449
      %467 = vmatpush.bf16.msra.mxu0 %v448
      %468 = vmatpush.bf16.msra.mxu0 %v447
      %469 = vmatpush.bf16.msra.mxu0 %v446
      %470 = vmatmul.bf16.gmra.mxu0 %v394
      %v471 = vpop.f32.mrf.mxu0
      %v472 = vadd.f32 0.0, %v471
      %v473 = vpop.f32.mrf.mxu0
      %v474 = vadd.f32 0.0, %v473
      %475 = vmatmul.bf16.gmra.mxu0 %v395
      %v476 = vpop.f32.mrf.mxu0
      %v477 = vadd.f32 0.0, %v476
      %v478 = vpop.f32.mrf.mxu0
      %v479 = vadd.f32 0.0, %v478
      %480 = vmatmul.bf16.gmra.mxu0 %v396
      %v481 = vpop.f32.mrf.mxu0
      %v482 = vadd.f32 0.0, %v481
      %v483 = vpop.f32.mrf.mxu0
      %v484 = vadd.f32 0.0, %v483
      %485 = vmatmul.bf16.gmra.mxu0 %v397
      %v486 = vpop.f32.mrf.mxu0
      %v487 = vadd.f32 0.0, %v486
      %v488 = vpop.f32.mrf.mxu0
      %v489 = vadd.f32 0.0, %v488
      %490 = vdwg.mxu0
      %v491 = vpack.c.bf16 %v472, %v472
      %v492 = vpack.c.bf16 %v474, %v474
      %v493 = vpack.c.bf16 %v477, %v477
      %v494 = vpack.c.bf16 %v479, %v479
      %v495 = vpack.c.bf16 %v482, %v482
      %v496 = vpack.c.bf16 %v484, %v484
      %v497 = vpack.c.bf16 %v487, %v487
      %v498 = vpack.c.bf16 %v489, %v489
      %499 = vst [vmem:[%s261] sm:$0xf] %v491
      %500 = vst [vmem:[%s261 + $0x4] sm:$0xf] %v492
      %501 = vst [vmem:[%s261 + $0x8] sm:$0xf] %v493
      %502 = vst [vmem:[%s261 + $0xc] sm:$0xf] %v494
      %503 = vst [vmem:[%s261 + $0x10] sm:$0xf] %v495
      %504 = vst [vmem:[%s261 + $0x14] sm:$0xf] %v496
      %505 = vst [vmem:[%s261 + $0x18] sm:$0xf] %v497
      %506 = vst [vmem:[%s261 + $0x1c] sm:$0xf] %v498
      %v507 = vld [vmem:[%s3] sm:$0xf]
      %v508 = vld [vmem:[%s3 + $0x4] sm:$0xf]
      %v509 = vld [vmem:[%s3 + $0x8] sm:$0xf]
      %v510 = vld [vmem:[%s3 + $0xc] sm:$0xf]
      %v511 = vld [vmem:[%s3 + $0x10] sm:$0xf]
      %v512 = vld [vmem:[%s3 + $0x14] sm:$0xf]
      %v513 = vld [vmem:[%s3 + $0x18] sm:$0xf]
      %v514 = vld [vmem:[%s3 + $0x1c] sm:$0xf]
      %v515 = vld [vmem:[%s3 + $0x20] sm:$0xf]
      %v516 = vld [vmem:[%s3 + $0x24] sm:$0xf]
      %v517 = vld [vmem:[%s3 + $0x28] sm:$0xf]
      %v518 = vld [vmem:[%s3 + $0x2c] sm:$0xf]
      %v519 = vld [vmem:[%s3 + $0x30] sm:$0xf]
      %v520 = vld [vmem:[%s3 + $0x34] sm:$0xf]
      %v521 = vld [vmem:[%s3 + $0x38] sm:$0xf]
      %v522 = vld [vmem:[%s3 + $0x3c] sm:$0xf]
      %v523 = vld [vmem:[%s4] sm:$0x1]
      %v525 = vperm.slane %v523, 0
      %v543 = vunpack.c.l.b16 %v507
      %v544 = vunpack.c.l.b16 %v508
      %v545 = vunpack.c.l.b16 %v509
      %v546 = vunpack.c.l.b16 %v510
      %v547 = vunpack.c.l.b16 %v511
      %v548 = vunpack.c.l.b16 %v512
      %v549 = vunpack.c.l.b16 %v513
      %v550 = vunpack.c.l.b16 %v514
      %v551 = vunpack.c.l.b16 %v515
      %v552 = vunpack.c.l.b16 %v516
      %v553 = vunpack.c.l.b16 %v517
      %v554 = vunpack.c.l.b16 %v518
      %v555 = vunpack.c.l.b16 %v519
      %v556 = vunpack.c.l.b16 %v520
      %v557 = vunpack.c.l.b16 %v521
      %v558 = vunpack.c.l.b16 %v522
      %v559 = vpack.c.b16 %v544, %v543
      %v560 = vpack.c.b16 %v546, %v545
      %v561 = vpack.c.b16 %v548, %v547
      %v562 = vpack.c.b16 %v550, %v549
      %v563 = vpack.c.b16 %v552, %v551
      %v564 = vpack.c.b16 %v554, %v553
      %v565 = vpack.c.b16 %v556, %v555
      %v566 = vpack.c.b16 %v558, %v557
      %575 = vmatpush.bf16.msra.mxu0 %v566
      %576 = vmatpush.bf16.msra.mxu0 %v565
      %577 = vmatpush.bf16.msra.mxu0 %v564
      %578 = vmatpush.bf16.msra.mxu0 %v563
      %579 = vmatpush.bf16.msra.mxu0 %v562
      %580 = vmatpush.bf16.msra.mxu0 %v561
      %581 = vmatpush.bf16.msra.mxu0 %v560
      %582 = vmatpush.bf16.msra.mxu0 %v559
      %583 = vmatmul.bf16.gmra.mxu0 %v309
      %v584 = vpop.f32.mrf.mxu0
      %v585 = vadd.f32 %v525, %v584
      %v586 = vpop.f32.mrf.mxu0
      %v587 = vadd.f32 %v525, %v586
      %588 = vmatmul.bf16.gmra.mxu0 %v310
      %v589 = vpop.f32.mrf.mxu0
      %v590 = vadd.f32 %v525, %v589
      %v591 = vpop.f32.mrf.mxu0
      %v592 = vadd.f32 %v525, %v591
      %593 = vmatmul.bf16.gmra.mxu0 %v311
      %v594 = vpop.f32.mrf.mxu0
      %v595 = vadd.f32 %v525, %v594
      %v596 = vpop.f32.mrf.mxu0
      %v597 = vadd.f32 %v525, %v596
      %598 = vmatmul.bf16.gmra.mxu0 %v312
      %v599 = vpop.f32.mrf.mxu0
      %v600 = vadd.f32 %v525, %v599
      %v601 = vpop.f32.mrf.mxu0
      %v602 = vadd.f32 %v525, %v601
      %603 = vdwg.mxu0
      %604 = vst [vmem:[%s267] sm:$0xff] %v585
      %605 = vst [vmem:[%s267 + $0x8] sm:$0xff] %v587
      %606 = vst [vmem:[%s267 + $0x10] sm:$0xff] %v590
      %607 = vst [vmem:[%s267 + $0x18] sm:$0xff] %v592
      %608 = vst [vmem:[%s267 + $0x20] sm:$0xff] %v595
      %609 = vst [vmem:[%s267 + $0x28] sm:$0xff] %v597
      %610 = vst [vmem:[%s267 + $0x30] sm:$0xff] %v600
      %611 = vst [vmem:[%s267 + $0x38] sm:$0xff] %v602
      %s612 = smul.u32 8, %s18
      %p613 = scmp.lt.s32.totalorder %s612, 15
      %s614 = scalar_select %p613, %s612, 15
      %s615 = smul.addr %s614, 4
      %s616 = scalar_lea.vmem %s5, %s615
      %s617 = smul.u32 8, %s18
      %p618 = scmp.lt.s32.totalorder %s617, 15
      %s619 = scalar_select %p618, %s617, 15
      %s620 = smul.addr %s619, 8
      %s621 = scalar_lea.vmem %s6, %s620
      // Predicated region
      $region41: #{res_block_forward.3} parent=39 // pred_check
        %p622 = pneg %p146
      $region42: #{res_block_forward.3} parent=39 // pred_check_branch
        %624 = sbr.rel (%p622) target = $region44
      $region43: #{res_block_forward.3} parent=39 // pred_region
        %s625 = smul.u32 8, %s18
      $region44: #{res_block_forward.3} parent=39 // pred_fallthru
        _
      // Predicated region
      $region45: #{res_block_forward.3} parent=39 // pred_check
        %p626 = pneg %p172
      $region46: #{res_block_forward.3} parent=39 // pred_check_branch
        %628 = sbr.rel (%p626) target = $region48
      $region47: #{res_block_forward.3} parent=39 // pred_region
        %s629 = smul.u32 8, %s18
      $region48: #{res_block_forward.3} parent=39 // pred_fallthru
        _
    $region40: #{res_block_forward.3} parent=5 // pred_fallthru
      _
    %p630 = scmp.le.s32.totalorder 2, %s13
    // Predicated region
    $region49: #{res_block_forward.3} parent=5 // pred_check
      %p631 = pneg %p630
    $region50: #{res_block_forward.3} parent=5 // pred_check_branch
      %633 = sbr.rel (%p631) target = $region52
    $region51: #{res_block_forward.3} parent=5 // pred_region
      %s634 = ssub.s32 %s13, 2
      // Predicated region
      $region53: #{res_block_forward.3} parent=51 // pred_check
        %p635 = pneg %p152
      $region54: #{res_block_forward.3} parent=51 // pred_check_branch
        %637 = sbr.rel (%p635) target = $region56
      $region55: #{res_block_forward.3} parent=51 // pred_region
        %s638 = smul.u32 8, %s19
        %p639 = scmp.lt.s32.totalorder %s638, 15
        %s640 = scalar_select %p639, %s638, 15
        %s641 = smul.addr %s640, 4
        %s642 = scalar_lea.vmem %s5, %s641
      $region56: #{res_block_forward.3} parent=51 // pred_fallthru
        _
      // Predicated region
      $region57: #{res_block_forward.3} parent=51 // pred_check
        %p643 = pneg %p178
      $region58: #{res_block_forward.3} parent=51 // pred_check_branch
        %645 = sbr.rel (%p643) target = $region60
      $region59: #{res_block_forward.3} parent=51 // pred_region
        %s646 = smul.u32 8, %s19
        %p647 = scmp.lt.s32.totalorder %s646, 15
        %s648 = scalar_select %p647, %s646, 15
        %s649 = smul.addr %s648, 8
        %s650 = scalar_lea.vmem %s6, %s649
      $region60: #{res_block_forward.3} parent=51 // pred_fallthru
        _
    $region52: #{res_block_forward.3} parent=5 // pred_fallthru
      _
  $region6: #{res_block_forward.3} parent=0 // loop_footer
    %s17 = sadd.s32 1, %s13
  $region7: #{res_block_forward.3} parent=0 // loop_footer_branch
    %12 = sbr.rel target = $region3
  $region8: #{res_block_forward.3} parent=0 // loop_exit
    _

// kernel: res_block_forward.5
$region0: #{res_block_forward.5}
  #allocation0 [shape = 'u32[]', space=smem, size = 0x4, offset = 0x4, fixed_abs, tag = 'smem constant byte address 0x4 - core index']
  #allocation1 [shape = 'u32[72,128]{1,0:T(1,128)}', space=vmem, size = 0x9000, scoped, tag = 'internal scratch']
  %s0 = inlined_call_operand.vmem [shape: f32[128,128], index: 0, kind: input, shape index: {}, may-alias: {0,2}]
  %s1 = inlined_call_operand.vmem [shape: f32[8,128], index: 1, kind: input, shape index: {}]
  %s2 = inlined_call_operand.vmem [shape: f32[128,128], index: 2, kind: output, shape index: {}, may-alias: {0,2}]
  %s3 = sld [smem:[#allocation0]]
  $region18: #{res_block_forward.5} parent=0
    _
  %s5 = ssub.s32 1, %s3
  %s6 = scalar_select 0, %s5, %s3
  // Predicated region
  $region2: #{res_block_forward.5} parent=0 // pred_check
    _
  $region3: #{res_block_forward.5} parent=0 // pred_check_branch
    %8 = sbr.rel (0) target = $region5
  $region4: #{res_block_forward.5} parent=0 // pred_region
    _
  $region5: #{res_block_forward.5} parent=0 // pred_fallthru
    _
  // Predicated region
  $region6: #{res_block_forward.5} parent=0 // pred_check
    _
  $region7: #{res_block_forward.5} parent=0 // pred_check_branch
    %10 = sbr.rel (0) target = $region9
  $region8: #{res_block_forward.5} parent=0 // pred_region
    _
  $region9: #{res_block_forward.5} parent=0 // pred_fallthru
    _
  %v11 = vld [vmem:[%s0] sm:$0xff]
  %v12 = vld [vmem:[%s0 + $0x8] sm:$0xff]
  %v13 = vld [vmem:[%s0 + $0x10] sm:$0xff]
  %v14 = vld [vmem:[%s0 + $0x18] sm:$0xff]
  %v15 = vld [vmem:[%s0 + $0x20] sm:$0xff]
  %v16 = vld [vmem:[%s0 + $0x28] sm:$0xff]
  %v17 = vld [vmem:[%s0 + $0x30] sm:$0xff]
  %v18 = vld [vmem:[%s0 + $0x38] sm:$0xff]
  %v19 = vld [vmem:[%s0 + $0x40] sm:$0xff]
  %v20 = vld [vmem:[%s0 + $0x48] sm:$0xff]
  %v21 = vld [vmem:[%s0 + $0x50] sm:$0xff]
  %v22 = vld [vmem:[%s0 + $0x58] sm:$0xff]
  %v23 = vld [vmem:[%s0 + $0x60] sm:$0xff]
  %v24 = vld [vmem:[%s0 + $0x68] sm:$0xff]
  %v25 = vld [vmem:[%s0 + $0x70] sm:$0xff]
  %v26 = vld [vmem:[%s0 + $0x78] sm:$0xff]
  %v27 = vld [vmem:[%s1] sm:$0x1]
  %v28 = vperm.slane %v27, 0
  %v29 = vmul.f32 %v11, %v28
  %v30 = vmul.f32 %v12, %v28
  %v31 = vmul.f32 %v13, %v28
  %v32 = vmul.f32 %v14, %v28
  %v33 = vmul.f32 %v15, %v28
  %v34 = vmul.f32 %v16, %v28
  %v35 = vmul.f32 %v17, %v28
  %v36 = vmul.f32 %v18, %v28
  %v37 = vmul.f32 %v19, %v28
  %v38 = vmul.f32 %v20, %v28
  %v39 = vmul.f32 %v21, %v28
  %v40 = vmul.f32 %v22, %v28
  %v41 = vmul.f32 %v23, %v28
  %v42 = vmul.f32 %v24, %v28
  %v43 = vmul.f32 %v25, %v28
  %v44 = vmul.f32 %v26, %v28
  %v45 = vld [vmem:[%s1 + $0x1] sm:$0x1]
  %v46 = vperm.slane %v45, 0
  %v47 = vadd.f32 %v29, %v46
  %v48 = vadd.f32 %v30, %v46
  %v49 = vadd.f32 %v31, %v46
  %v50 = vadd.f32 %v32, %v46
  %v51 = vadd.f32 %v33, %v46
  %v52 = vadd.f32 %v34, %v46
  %v53 = vadd.f32 %v35, %v46
  %v54 = vadd.f32 %v36, %v46
  %v55 = vadd.f32 %v37, %v46
  %v56 = vadd.f32 %v38, %v46
  %v57 = vadd.f32 %v39, %v46
  %v58 = vadd.f32 %v40, %v46
  %v59 = vadd.f32 %v41, %v46
  %v60 = vadd.f32 %v42, %v46
  %v61 = vadd.f32 %v43, %v46
  %v62 = vadd.f32 %v44, %v46
  %63 = vst [vmem:[%s2] sm:$0xff] %v47
  %64 = vst [vmem:[%s2 + $0x8] sm:$0xff] %v48
  %65 = vst [vmem:[%s2 + $0x10] sm:$0xff] %v49
  %66 = vst [vmem:[%s2 + $0x18] sm:$0xff] %v50
  %67 = vst [vmem:[%s2 + $0x20] sm:$0xff] %v51
  %68 = vst [vmem:[%s2 + $0x28] sm:$0xff] %v52
  %69 = vst [vmem:[%s2 + $0x30] sm:$0xff] %v53
  %70 = vst [vmem:[%s2 + $0x38] sm:$0xff] %v54
  %71 = vst [vmem:[%s2 + $0x40] sm:$0xff] %v55
  %72 = vst [vmem:[%s2 + $0x48] sm:$0xff] %v56
  %73 = vst [vmem:[%s2 + $0x50] sm:$0xff] %v57
  %74 = vst [vmem:[%s2 + $0x58] sm:$0xff] %v58
  %75 = vst [vmem:[%s2 + $0x60] sm:$0xff] %v59
  %76 = vst [vmem:[%s2 + $0x68] sm:$0xff] %v60
  %77 = vst [vmem:[%s2 + $0x70] sm:$0xff] %v61
  %78 = vst [vmem:[%s2 + $0x78] sm:$0xff] %v62
  // Predicated region
  $region10: #{res_block_forward.5} parent=0 // pred_check
    _
  $region11: #{res_block_forward.5} parent=0 // pred_check_branch
    %80 = sbr.rel (0) target = $region13
  $region12: #{res_block_forward.5} parent=0 // pred_region
    _
  $region13: #{res_block_forward.5} parent=0 // pred_fallthru
    _
  // Predicated region
  $region14: #{res_block_forward.5} parent=0 // pred_check
    _
  $region15: #{res_block_forward.5} parent=0 // pred_check_branch
    %82 = sbr.rel (0) target = $region17
  $region16: #{res_block_forward.5} parent=0 // pred_region
    _
  $region17: #{res_block_forward.5} parent=0 // pred_fallthru
    _

// kernel: res_block_forward.4
$region0: #{res_block_forward.4}
  #allocation0 [shape = 'u32[]', space=smem, size = 0x4, offset = 0x4, fixed_abs, tag = 'smem constant byte address 0x4 - core index']
  #allocation1 [shape = 'u32[72,128]{1,0:T(1,128)}', space=vmem, size = 0x9000, scoped, tag = 'internal scratch']
  %s0 = inlined_call_operand.vmem [shape: bf16[128,128], index: 0, kind: input, shape index: {}]
  %s1 = inlined_call_operand.vmem [shape: bf16[128,128], index: 1, kind: input, shape index: {}]
  %s2 = inlined_call_operand.vmem [shape: f32[128,128], index: 2, kind: input, shape index: {}]
  %s3 = inlined_call_operand.vmem [shape: f32[128,128], index: 3, kind: output, shape index: {0}]
  %s4 = inlined_call_operand.vmem [shape: f32[16,128], index: 4, kind: output, shape index: {1}]
  %5 = xla_tuple %s3, %s4
  %s6 = sld [smem:[#allocation0]]
  $region53: #{res_block_forward.4} parent=0
    _
  %s8 = ssub.s32 1, %s6
  %s9 = scalar_select 0, %s8, %s6
  loop: start=0, step=1, limit=4
  $region2: #{res_block_forward.4} parent=0 // loop_pre_header
    _
  $region3: #{res_block_forward.4} parent=0 // loop_header
    %s11 = sphi 0, %s15
    %p12 = scmp.ge.s32.totalorder %s11, 4
    %s21 = sphi 0, %s23
    %s24 = sphi 0, %s21
    %s25 = sphi 0, %s24
    %s41 = sphi 0, %s25
    %s45 = sphi 0, %s45
    %s47 = sphi 0, %s45
    %s48 = sphi 0, %s47
    %s62 = sphi 0, %s48
    %s68 = sphi 0, %s70
    %s71 = sphi 0, %s68
    %s72 = sphi 0, %s71
    %s88 = sphi 0, %s72
    %s94 = sphi 0, %s96
    %s97 = sphi 0, %s94
    %s98 = sphi 0, %s97
    %s114 = sphi 0, %s98
    %s120 = sphi 0, %s122
    %s123 = sphi 0, %s120
    %s124 = sphi 0, %s123
    %s140 = sphi 0, %s124
  $region4: #{res_block_forward.4} parent=0 // loop_header_branch
    %14 = sbr.rel (%p12) target = $region8
  $region5: #{res_block_forward.4} parent=0 // loop_body
    %s16 = ssub.s32 %s11, 1
    %s17 = ssub.s32 %s11, 2
    %s18 = sadd.s32 %s11, 1
    %s19 = ssub.s32 %s11, %s18
    %p20 = scmp.eq.s32.totalorder %s19, 0
    %s22 = sadd.s32 %s21, 1
    %s23 = scalar_select %p20, %s21, %s22
    %p26 = pneg %p20
    %p27 = scmp.eq.s32.totalorder %s11, 1
    %p28 = por %p26, %p27
    %p29 = scmp.ne.s32.totalorder %s21, %s24
    %p30 = scmp.eq.s32.totalorder %s11, 0
    %p31 = por %p29, %p30
    %p32 = scmp.ne.s32.totalorder %s21, %s24
    %p33 = scmp.eq.s32.totalorder %s16, 1
    %p34 = por %p32, %p33
    %p35 = scmp.ne.s32.totalorder %s24, %s25
    %p36 = scmp.eq.s32.totalorder %s16, 0
    %p37 = por %p35, %p36
    %p38 = scmp.ne.s32.totalorder %s24, %s25
    %p39 = scmp.eq.s32.totalorder %s17, 1
    %p40 = por %p38, %p39
    %p42 = scmp.ne.s32.totalorder %s25, %s41
    %p43 = scmp.eq.s32.totalorder %s17, 0
    %p44 = por %p42, %p43
    %s46 = sadd.s32 %s45, 1
    %p49 = scmp.eq.s32.totalorder %s11, 1
    %p50 = scmp.ne.s32.totalorder %s45, %s47
    %p51 = scmp.eq.s32.totalorder %s11, 0
    %p52 = por %p50, %p51
    %p53 = scmp.ne.s32.totalorder %s45, %s47
    %p54 = scmp.eq.s32.totalorder %s16, 1
    %p55 = por %p53, %p54
    %p56 = scmp.ne.s32.totalorder %s47, %s48
    %p57 = scmp.eq.s32.totalorder %s16, 0
    %p58 = por %p56, %p57
    %p59 = scmp.ne.s32.totalorder %s47, %s48
    %p60 = scmp.eq.s32.totalorder %s17, 1
    %p61 = por %p59, %p60
    %p63 = scmp.ne.s32.totalorder %s48, %s62
    %p64 = scmp.eq.s32.totalorder %s17, 0
    %p65 = por %p63, %p64
    %s66 = ssub.s32 %s11, %s18
    %p67 = scmp.eq.s32.totalorder %s66, 0
    %s69 = sadd.s32 %s68, 1
    %s70 = scalar_select %p67, %s68, %s69
    %p73 = pneg %p67
    %p74 = scmp.eq.s32.totalorder %s11, 1
    %p75 = por %p73, %p74
    %p76 = scmp.ne.s32.totalorder %s68, %s71
    %p77 = scmp.eq.s32.totalorder %s11, 0
    %p78 = por %p76, %p77
    %p79 = scmp.ne.s32.totalorder %s68, %s71
    %p80 = scmp.eq.s32.totalorder %s16, 1
    %p81 = por %p79, %p80
    %p82 = scmp.ne.s32.totalorder %s71, %s72
    %p83 = scmp.eq.s32.totalorder %s16, 0
    %p84 = por %p82, %p83
    %p85 = scmp.ne.s32.totalorder %s71, %s72
    %p86 = scmp.eq.s32.totalorder %s17, 1
    %p87 = por %p85, %p86
    %p89 = scmp.ne.s32.totalorder %s72, %s88
    %p90 = scmp.eq.s32.totalorder %s17, 0
    %p91 = por %p89, %p90
    %s92 = ssub.s32 %s11, %s18
    %p93 = scmp.eq.s32.totalorder %s92, 0
    %s95 = sadd.s32 %s94, 1
    %s96 = scalar_select %p93, %s94, %s95
    %p99 = pneg %p93
    %p100 = scmp.eq.s32.totalorder %s11, 1
    %p101 = por %p99, %p100
    %p102 = scmp.ne.s32.totalorder %s94, %s97
    %p103 = scmp.eq.s32.totalorder %s11, 0
    %p104 = por %p102, %p103
    %p105 = scmp.ne.s32.totalorder %s94, %s97
    %p106 = scmp.eq.s32.totalorder %s16, 1
    %p107 = por %p105, %p106
    %p108 = scmp.ne.s32.totalorder %s97, %s98
    %p109 = scmp.eq.s32.totalorder %s16, 0
    %p110 = por %p108, %p109
    %p111 = scmp.ne.s32.totalorder %s97, %s98
    %p112 = scmp.eq.s32.totalorder %s17, 1
    %p113 = por %p111, %p112
    %p115 = scmp.ne.s32.totalorder %s98, %s114
    %p116 = scmp.eq.s32.totalorder %s17, 0
    %p117 = por %p115, %p116
    %s118 = ssub.s32 %s11, %s18
    %p119 = scmp.eq.s32.totalorder %s118, 0
    %s121 = sadd.s32 %s120, 1
    %s122 = scalar_select %p119, %s120, %s121
    %p125 = pneg %p119
    %p126 = scmp.eq.s32.totalorder %s11, 1
    %p127 = por %p125, %p126
    %p128 = scmp.ne.s32.totalorder %s120, %s123
    %p129 = scmp.eq.s32.totalorder %s11, 0
    %p130 = por %p128, %p129
    %p131 = scmp.ne.s32.totalorder %s120, %s123
    %p132 = scmp.eq.s32.totalorder %s16, 1
    %p133 = por %p131, %p132
    %p134 = scmp.ne.s32.totalorder %s123, %s124
    %p135 = scmp.eq.s32.totalorder %s16, 0
    %p136 = por %p134, %p135
    %p137 = scmp.ne.s32.totalorder %s123, %s124
    %p138 = scmp.eq.s32.totalorder %s17, 1
    %p139 = por %p137, %p138
    %p141 = scmp.ne.s32.totalorder %s124, %s140
    %p142 = scmp.eq.s32.totalorder %s17, 0
    %p143 = por %p141, %p142
    %p144 = scmp.le.s32.totalorder 1, %s11
    %p145 = scmp.lt.s32.totalorder %s11, 3
    %p146 = pnand %p144, %p145
    %p147 = pneg %p146
    // Predicated region
    $region9: #{res_block_forward.4} parent=5 // pred_check
      _
    $region10: #{res_block_forward.4} parent=5 // pred_check_branch
      %149 = sbr.rel (%p146) target = $region12
    $region11: #{res_block_forward.4} parent=5 // pred_region
      %s150 = ssub.s32 %s11, 1
      // Predicated region
      $region13: #{res_block_forward.4} parent=11 // pred_check
        %p151 = pneg %p58
      $region14: #{res_block_forward.4} parent=11 // pred_check_branch
        %153 = sbr.rel (%p151) target = $region16
      $region15: #{res_block_forward.4} parent=11 // pred_region
        _
      $region16: #{res_block_forward.4} parent=11 // pred_fallthru
        _
    $region12: #{res_block_forward.4} parent=5 // pred_fallthru
      _
    %p154 = scmp.lt.s32.totalorder %s11, 2
    // Predicated region
    $region17: #{res_block_forward.4} parent=5 // pred_check
      %p155 = pneg %p154
    $region18: #{res_block_forward.4} parent=5 // pred_check_branch
      %157 = sbr.rel (%p155) target = $region20
    $region19: #{res_block_forward.4} parent=5 // pred_region
      // Predicated region
      $region21: #{res_block_forward.4} parent=19 // pred_check
        %p158 = pneg %p31
      $region22: #{res_block_forward.4} parent=19 // pred_check_branch
        %160 = sbr.rel (%p158) target = $region24
      $region23: #{res_block_forward.4} parent=19 // pred_region
        %s161 = smul.u32 8, %s11
        %p162 = scmp.lt.s32.totalorder %s161, 15
        %s163 = scalar_select %p162, %s161, 15
        %s164 = smul.addr %s163, 4
        %s165 = scalar_lea.vmem %s0, %s164
        %s166 = smul.u32 8, %s11
      $region24: #{res_block_forward.4} parent=19 // pred_fallthru
        _
      // Predicated region
      $region25: #{res_block_forward.4} parent=19 // pred_check
        %p167 = pneg %p78
      $region26: #{res_block_forward.4} parent=19 // pred_check_branch
        %169 = sbr.rel (%p167) target = $region28
      $region27: #{res_block_forward.4} parent=19 // pred_region
        %s170 = smul.u32 8, %s11
        %p171 = scmp.lt.s32.totalorder %s170, 15
        %s172 = scalar_select %p171, %s170, 15
        %s173 = smul.addr %s172, 8
        %s174 = scalar_lea.vmem %s2, %s173
        %s175 = smul.u32 8, %s11
      $region28: #{res_block_forward.4} parent=19 // pred_fallthru
        _
    $region20: #{res_block_forward.4} parent=5 // pred_fallthru
      _
    %p176 = scmp.le.s32.totalorder 1, %s11
    %p177 = scmp.lt.s32.totalorder %s11, 3
    %p178 = pnand %p176, %p177
    %p179 = pneg %p178
    // Predicated region
    $region29: #{res_block_forward.4} parent=5 // pred_check
      _
    $region30: #{res_block_forward.4} parent=5 // pred_check_branch
      %181 = sbr.rel (%p178) target = $region32
    $region31: #{res_block_forward.4} parent=5 // pred_region
      %s182 = ssub.s32 %s11, 1
      %s183 = smul.u32 8, %s16
      %p184 = scmp.lt.s32.totalorder %s183, 15
      %s185 = scalar_select %p184, %s183, 15
      %s186 = smul.addr %s185, 4
      %s187 = scalar_lea.vmem %s0, %s186
      %p188 = pneg %p37
      %p189 = pneg %p34
      %p190 = pneg %p58
      %p191 = pneg %p55
      %s192 = smul.u32 8, %s16
      %p193 = scmp.lt.s32.totalorder %s192, 15
      %s194 = scalar_select %p193, %s192, 15
      %s195 = smul.addr %s194, 8
      %s196 = scalar_lea.vmem %s2, %s195
      %p197 = pneg %p84
      %p198 = pneg %p81
      %p199 = pneg %p110
      %p200 = pneg %p107
      %s201 = smul.u32 8, %s16
      %p202 = scmp.lt.s32.totalorder %s201, 15
      %s203 = scalar_select %p202, %s201, 15
      %s204 = smul.addr %s203, 8
      %s205 = scalar_lea.vmem %s3, %s204
      %p206 = pneg %p136
      %p207 = pneg %p133
      %p208 = scmp.lt.s32.totalorder %s16, 1
      %s209 = scalar_select %p208, %s16, 1
      %s210 = smul.addr %s209, 8
      %s211 = scalar_lea.vmem %s4, %s210
      %s212 = smul.u32 8, %s16
      %p213 = scmp.lt.s32.totalorder %s212, 15
      %s214 = scalar_select %p213, %s212, 15
      %s215 = smul.addr %s214, 4
      %s216 = scalar_lea.vmem %s0, %s215
      %s217 = smul.u32 8, %s16
      %s218 = smul.u32 8, %s16
      %p219 = scmp.lt.s32.totalorder %s218, 15
      %s220 = scalar_select %p219, %s218, 15
      %s221 = smul.addr %s220, 8
      %s222 = scalar_lea.vmem %s2, %s221
      %s223 = smul.u32 8, %s16
      %s224 = smul.u32 8, %s16
      %p225 = scmp.lt.s32.totalorder %s224, 15
      %s226 = scalar_select %p225, %s224, 15
      %s227 = smul.addr %s226, 8
      %s228 = scalar_lea.vmem %s3, %s227
      %s229 = smul.u32 8, %s16
      %p230 = scmp.lt.s32.totalorder %s16, 1
      %s231 = scalar_select %p230, %s16, 1
      %s232 = smul.addr %s231, 8
      %s233 = scalar_lea.vmem %s4, %s232
      %v234 = vld [vmem:[%s216] sm:$0xf]
      %v235 = vld [vmem:[%s216 + $0x4] sm:$0xf]
      %v236 = vld [vmem:[%s216 + $0x8] sm:$0xf]
      %v237 = vld [vmem:[%s216 + $0xc] sm:$0xf]
      %v238 = vld [vmem:[%s216 + $0x10] sm:$0xf]
      %v239 = vld [vmem:[%s216 + $0x14] sm:$0xf]
      %v240 = vld [vmem:[%s216 + $0x18] sm:$0xf]
      %v241 = vld [vmem:[%s216 + $0x1c] sm:$0xf]
      %v242 = vld [vmem:[%s1] sm:$0xf]
      %v243 = vld [vmem:[%s1 + $0x4] sm:$0xf]
      %v244 = vld [vmem:[%s1 + $0x8] sm:$0xf]
      %v245 = vld [vmem:[%s1 + $0xc] sm:$0xf]
      %v246 = vld [vmem:[%s1 + $0x10] sm:$0xf]
      %v247 = vld [vmem:[%s1 + $0x14] sm:$0xf]
      %v248 = vld [vmem:[%s1 + $0x18] sm:$0xf]
      %v249 = vld [vmem:[%s1 + $0x1c] sm:$0xf]
      %v250 = vld [vmem:[%s1 + $0x20] sm:$0xf]
      %v251 = vld [vmem:[%s1 + $0x24] sm:$0xf]
      %v252 = vld [vmem:[%s1 + $0x28] sm:$0xf]
      %v253 = vld [vmem:[%s1 + $0x2c] sm:$0xf]
      %v254 = vld [vmem:[%s1 + $0x30] sm:$0xf]
      %v255 = vld [vmem:[%s1 + $0x34] sm:$0xf]
      %v256 = vld [vmem:[%s1 + $0x38] sm:$0xf]
      %v257 = vld [vmem:[%s1 + $0x3c] sm:$0xf]
      %v258 = vld [vmem:[%s222] sm:$0xff]
      %v259 = vld [vmem:[%s222 + $0x8] sm:$0xff]
      %v260 = vld [vmem:[%s222 + $0x10] sm:$0xff]
      %v261 = vld [vmem:[%s222 + $0x18] sm:$0xff]
      %v262 = vld [vmem:[%s222 + $0x20] sm:$0xff]
      %v263 = vld [vmem:[%s222 + $0x28] sm:$0xff]
      %v264 = vld [vmem:[%s222 + $0x30] sm:$0xff]
      %v265 = vld [vmem:[%s222 + $0x38] sm:$0xff]
      %v274 = vunpack.c.l.b16 %v234
      %v275 = vunpack.c.l.b16 %v235
      %v276 = vunpack.c.l.b16 %v236
      %v277 = vunpack.c.l.b16 %v237
      %v278 = vunpack.c.l.b16 %v238
      %v279 = vunpack.c.l.b16 %v239
      %v280 = vunpack.c.l.b16 %v240
      %v281 = vunpack.c.l.b16 %v241
      %v282 = vpack.c.b16 %v275, %v274
      %v283 = vpack.c.b16 %v277, %v276
      %v284 = vpack.c.b16 %v279, %v278
      %v285 = vpack.c.b16 %v281, %v280
      %v306 = vunpack.c.l.b16 %v242
      %v307 = vunpack.c.l.b16 %v243
      %v308 = vunpack.c.l.b16 %v244
      %v309 = vunpack.c.l.b16 %v245
      %v310 = vunpack.c.l.b16 %v246
      %v311 = vunpack.c.l.b16 %v247
      %v312 = vunpack.c.l.b16 %v248
      %v313 = vunpack.c.l.b16 %v249
      %v314 = vunpack.c.l.b16 %v250
      %v315 = vunpack.c.l.b16 %v251
      %v316 = vunpack.c.l.b16 %v252
      %v317 = vunpack.c.l.b16 %v253
      %v318 = vunpack.c.l.b16 %v254
      %v319 = vunpack.c.l.b16 %v255
      %v320 = vunpack.c.l.b16 %v256
      %v321 = vunpack.c.l.b16 %v257
      %v322 = vpack.c.b16 %v307, %v306
      %v323 = vpack.c.b16 %v309, %v308
      %v324 = vpack.c.b16 %v311, %v310
      %v325 = vpack.c.b16 %v313, %v312
      %v326 = vpack.c.b16 %v315, %v314
      %v327 = vpack.c.b16 %v317, %v316
      %v328 = vpack.c.b16 %v319, %v318
      %v329 = vpack.c.b16 %v321, %v320
      %338 = vmatpush.bf16.msra.mxu0 %v329
      %339 = vmatpush.bf16.msra.mxu0 %v328
      %340 = vmatpush.bf16.msra.mxu0 %v327
      %341 = vmatpush.bf16.msra.mxu0 %v326
      %342 = vmatpush.bf16.msra.mxu0 %v325
      %343 = vmatpush.bf16.msra.mxu0 %v324
      %344 = vmatpush.bf16.msra.mxu0 %v323
      %345 = vmatpush.bf16.msra.mxu0 %v322
      %346 = vmatmul.bf16.gmra.mxu0 %v282
      %v347 = vpop.f32.mrf.mxu0
      %v348 = vadd.f32 %v258, %v347
      %v349 = vpop.f32.mrf.mxu0
      %v350 = vadd.f32 %v259, %v349
      %351 = vmatmul.bf16.gmra.mxu0 %v283
      %v352 = vpop.f32.mrf.mxu0
      %v353 = vadd.f32 %v260, %v352
      %v354 = vpop.f32.mrf.mxu0
      %v355 = vadd.f32 %v261, %v354
      %356 = vmatmul.bf16.gmra.mxu0 %v284
      %v357 = vpop.f32.mrf.mxu0
      %v358 = vadd.f32 %v262, %v357
      %v359 = vpop.f32.mrf.mxu0
      %v360 = vadd.f32 %v263, %v359
      %361 = vmatmul.bf16.gmra.mxu0 %v285
      %v362 = vpop.f32.mrf.mxu0
      %v363 = vadd.f32 %v264, %v362
      %v364 = vpop.f32.mrf.mxu0
      %v365 = vadd.f32 %v265, %v364
      %366 = vdwg.mxu0
      %367 = vst [vmem:[%s228] sm:$0xff] %v348
      %368 = vst [vmem:[%s228 + $0x8] sm:$0xff] %v350
      %369 = vst [vmem:[%s228 + $0x10] sm:$0xff] %v353
      %370 = vst [vmem:[%s228 + $0x18] sm:$0xff] %v355
      %371 = vst [vmem:[%s228 + $0x20] sm:$0xff] %v358
      %372 = vst [vmem:[%s228 + $0x28] sm:$0xff] %v360
      %373 = vst [vmem:[%s228 + $0x30] sm:$0xff] %v363
      %374 = vst [vmem:[%s228 + $0x38] sm:$0xff] %v365
      %s375 = smul.u32 %s16, 64
      %v376 = vlaneseq
      %v377 = vshrl.u32 %v376, 7
      %v378 = vadd.s32 %v377, 8
      %v379 = vadd.s32 %v377, 16
      %v380 = vadd.s32 %v377, 24
      %v381 = vadd.s32 %v377, 32
      %v382 = vadd.s32 %v377, 40
      %v383 = vadd.s32 %v377, 48
      %v384 = vadd.s32 %v377, 56
      %v385 = vstv %s375
      %v386 = vadd.s32 %v385, %v377
      %v387 = vadd.s32 %v385, %v378
      %v388 = vadd.s32 %v385, %v379
      %v389 = vadd.s32 %v385, %v380
      %v390 = vadd.s32 %v385, %v381
      %v391 = vadd.s32 %v385, %v382
      %v392 = vadd.s32 %v385, %v383
      %v393 = vadd.s32 %v385, %v384
      %vm394 = vcmp.lt.s32.totalorder %v386, 128
      %vm395 = vcmp.lt.s32.totalorder %v387, 128
      %vm396 = vcmp.lt.s32.totalorder %v388, 128
      %vm397 = vcmp.lt.s32.totalorder %v389, 128
      %vm398 = vcmp.lt.s32.totalorder %v390, 128
      %vm399 = vcmp.lt.s32.totalorder %v391, 128
      %vm400 = vcmp.lt.s32.totalorder %v392, 128
      %vm401 = vcmp.lt.s32.totalorder %v393, 128
      %s402 = ssub.s32 128, %s375
      %p403 = scmp.lt.s32.totalorder %s402, 64
      %s404 = scalar_select %p403, %s402, 64
      %s405 = scvt.s32.f32 %s404
      %v406 = vsel %vm394, 1, 0
      %v407 = vsel %vm395, 1, 0
      %v408 = vsel %vm396, 1, 0
      %v409 = vsel %vm397, 1, 0
      %v410 = vsel %vm398, 1, 0
      %v411 = vsel %vm399, 1, 0
      %v412 = vsel %vm400, 1, 0
      %v413 = vsel %vm401, 1, 0
      %vm414 = vcmp.eq.s32.totalorder %v406, 1
      %vm415 = vcmp.eq.s32.totalorder %v407, 1
      %vm416 = vcmp.eq.s32.totalorder %v408, 1
      %vm417 = vcmp.eq.s32.totalorder %v409, 1
      %vm418 = vcmp.eq.s32.totalorder %v410, 1
      %vm419 = vcmp.eq.s32.totalorder %v411, 1
      %vm420 = vcmp.eq.s32.totalorder %v412, 1
      %vm421 = vcmp.eq.s32.totalorder %v413, 1
      %v422 = vsel %vm414, %v348, 0.0
      %v423 = vsel %vm415, %v350, 0.0
      %v424 = vsel %vm416, %v353, 0.0
      %v425 = vsel %vm417, %v355, 0.0
      %v426 = vsel %vm418, %v358, 0.0
      %v427 = vsel %vm419, %v360, 0.0
      %v428 = vsel %vm420, %v363, 0.0
      %v429 = vsel %vm421, %v365, 0.0
      %v430 = vadd.f32 %v422, %v423
      %v431 = vadd.f32 %v430, %v424
      %v432 = vadd.f32 %v431, %v425
      %v433 = vadd.f32 %v432, %v426
      %v434 = vadd.f32 %v433, %v427
      %v435 = vadd.f32 %v434, %v428
      %v436 = vadd.f32 %v435, %v429
      %v437 = vrot.slane %v436, 4
      %v438 = vadd.f32 %v436, %v437
      %v439 = vrot.slane %v438, 2
      %v440 = vadd.f32 %v438, %v439
      %v441 = vrot.slane %v440, 1
      %v442 = vadd.f32 %v440, %v441
      %v443 = vstv %s405
      %v444 = vrcp.pop %v443
      %v445 = vmul.f32 %v443, %v444
      %v446 = vsub.f32 1.0, %v445
      %v447 = vmul.f32 %v444, %v446
      %v448 = vadd.f32 %v444, %v447
      %vm449 = vweird.f32 %v443
      %vm450 = vweird.f32 %v444
      %vm451 = vmor %vm449, %vm450
      %v452 = vsel %vm451, %v444, %v448
      %v453 = vand.u32 2147483647, %v443
      %vm454 = vcmp.eq.f32.partialorder %v453, 8.507059e+37
      %v455 = vand.u32 %v443, 2147483648
      %v456 = vor.u32 1.1754944e-38, %v455
      %v457 = vsel %vm454, %v456, %v452
      %v458 = vmul.f32 %v442, %v457
      %v459 = vsub.f32 %v348, %v458
      %v460 = vsub.f32 %v350, %v458
      %v461 = vsub.f32 %v353, %v458
      %v462 = vsub.f32 %v355, %v458
      %v463 = vsub.f32 %v358, %v458
      %v464 = vsub.f32 %v360, %v458
      %v465 = vsub.f32 %v363, %v458
      %v466 = vsub.f32 %v365, %v458
      %v467 = vsel %vm414, %v459, 0.0
      %v468 = vsel %vm415, %v460, 0.0
      %v469 = vsel %vm416, %v461, 0.0
      %v470 = vsel %vm417, %v462, 0.0
      %v471 = vsel %vm418, %v463, 0.0
      %v472 = vsel %vm419, %v464, 0.0
      %v473 = vsel %vm420, %v465, 0.0
      %v474 = vsel %vm421, %v466, 0.0
      %v475 = vmul.f32 %v467, %v467
      %v476 = vmul.f32 %v468, %v468
      %v477 = vmul.f32 %v469, %v469
      %v478 = vmul.f32 %v470, %v470
      %v479 = vmul.f32 %v471, %v471
      %v480 = vmul.f32 %v472, %v472
      %v481 = vmul.f32 %v473, %v473
      %v482 = vmul.f32 %v474, %v474
      %v483 = vadd.f32 %v475, %v476
      %v484 = vadd.f32 %v483, %v477
      %v485 = vadd.f32 %v484, %v478
      %v486 = vadd.f32 %v485, %v479
      %v487 = vadd.f32 %v486, %v480
      %v488 = vadd.f32 %v487, %v481
      %v489 = vadd.f32 %v488, %v482
      %v490 = vrot.slane %v489, 4
      %v491 = vadd.f32 %v489, %v490
      %v492 = vrot.slane %v491, 2
      %v493 = vadd.f32 %v491, %v492
      %v494 = vrot.slane %v493, 1
      %v495 = vadd.f32 %v493, %v494
      %vm496 = vcmp.eq.s32.totalorder %v377, 0
      %vm497 = vcmp.eq.s32.totalorder %v377, 1
      %v498 = vsel %vm497, 1, 0
      %vm499 = vcmp.eq.s32.totalorder %v498, 1
      %v500 = vsel %vm499, %v495, 0.0
      %v501 = vsel %vm496, 1, 0
      %vm502 = vcmp.eq.s32.totalorder %v501, 1
      %v503 = vsel %vm502, %v442, %v500
      %504 = vst [vmem:[%s233] sm:$0xff] %v503
      %s505 = smul.u32 8, %s16
      %p506 = scmp.lt.s32.totalorder %s505, 15
      %s507 = scalar_select %p506, %s505, 15
      %s508 = smul.addr %s507, 8
      %s509 = scalar_lea.vmem %s3, %s508
      %p510 = scmp.lt.s32.totalorder %s16, 1
      %s511 = scalar_select %p510, %s16, 1
      %s512 = smul.addr %s511, 8
      %s513 = scalar_lea.vmem %s4, %s512
      // Predicated region
      $region33: #{res_block_forward.4} parent=31 // pred_check
        %p514 = pneg %p107
      $region34: #{res_block_forward.4} parent=31 // pred_check_branch
        %516 = sbr.rel (%p514) target = $region36
      $region35: #{res_block_forward.4} parent=31 // pred_region
        %s517 = smul.u32 8, %s16
      $region36: #{res_block_forward.4} parent=31 // pred_fallthru
        _
      // Predicated region
      $region37: #{res_block_forward.4} parent=31 // pred_check
        %p518 = pneg %p133
      $region38: #{res_block_forward.4} parent=31 // pred_check_branch
        %520 = sbr.rel (%p518) target = $region40
      $region39: #{res_block_forward.4} parent=31 // pred_region
        _
      $region40: #{res_block_forward.4} parent=31 // pred_fallthru
        _
    $region32: #{res_block_forward.4} parent=5 // pred_fallthru
      _
    %p521 = scmp.le.s32.totalorder 2, %s11
    // Predicated region
    $region41: #{res_block_forward.4} parent=5 // pred_check
      %p522 = pneg %p521
    $region42: #{res_block_forward.4} parent=5 // pred_check_branch
      %524 = sbr.rel (%p522) target = $region44
    $region43: #{res_block_forward.4} parent=5 // pred_region
      %s525 = ssub.s32 %s11, 2
      // Predicated region
      $region45: #{res_block_forward.4} parent=43 // pred_check
        %p526 = pneg %p113
      $region46: #{res_block_forward.4} parent=43 // pred_check_branch
        %528 = sbr.rel (%p526) target = $region48
      $region47: #{res_block_forward.4} parent=43 // pred_region
        %s529 = smul.u32 8, %s17
        %p530 = scmp.lt.s32.totalorder %s529, 15
        %s531 = scalar_select %p530, %s529, 15
        %s532 = smul.addr %s531, 8
        %s533 = scalar_lea.vmem %s3, %s532
      $region48: #{res_block_forward.4} parent=43 // pred_fallthru
        _
      // Predicated region
      $region49: #{res_block_forward.4} parent=43 // pred_check
        %p534 = pneg %p139
      $region50: #{res_block_forward.4} parent=43 // pred_check_branch
        %536 = sbr.rel (%p534) target = $region52
      $region51: #{res_block_forward.4} parent=43 // pred_region
        %p537 = scmp.lt.s32.totalorder %s17, 1
        %s538 = scalar_select %p537, %s17, 1
        %s539 = smul.addr %s538, 8
        %s540 = scalar_lea.vmem %s4, %s539
      $region52: #{res_block_forward.4} parent=43 // pred_fallthru
        _
    $region44: #{res_block_forward.4} parent=5 // pred_fallthru
      _
  $region6: #{res_block_forward.4} parent=0 // loop_footer
    %s15 = sadd.s32 1, %s11
  $region7: #{res_block_forward.4} parent=0 // loop_footer_branch
    %10 = sbr.rel target = $region3
  $region8: #{res_block_forward.4} parent=0 // loop_exit
    _

</llo_original>
